<compile_context>
chip_gen: v7x
topology: tpu7x:2x2x1
jax: 0.10.0
libtpu: 0.0.40
codegen_flags: <defaults>
</compile_context>

<pallas_src>
import functools
import math

import numpy as np
import jax
import jax.numpy as jnp
from jax.experimental import pallas as pl
from jax.experimental.pallas import tpu as pltpu


# ----------------------------------------------------------------------------- tiling helper
def _pick_tile(dim, preferred, align):
    """Largest tile <= preferred that is a multiple of `align` and divides `dim`.
    Falls back to the full dimension (always legal for a BlockSpec)."""
    if dim <= preferred or dim % align != 0:
        return dim
    t = (min(preferred, dim) // align) * align
    while t >= align:
        if dim % t == 0:
            return t
        t -= align
    return dim


# ----------------------------------------------------------------------------- fused LayerNorm + Conv1D
def _ln_linear_kernel(x_ref, g_ref, b_ref, w_ref, bias_ref, o_ref, *, eps, activation):
    x = x_ref[...].astype(jnp.float32)
    mean = jnp.mean(x, axis=-1, keepdims=True)
    var = jnp.mean(jnp.square(x - mean), axis=-1, keepdims=True)   # biased, like torch LayerNorm
    xn = (x - mean) * jax.lax.rsqrt(var + eps)
    xn = xn * g_ref[...].astype(jnp.float32) + b_ref[...].astype(jnp.float32)
    # bf16 operands -> full-rate MXU, f32 accumulation.
    y = jnp.dot(xn.astype(w_ref.dtype), w_ref[...], preferred_element_type=jnp.float32)
    y = y + bias_ref[...].astype(jnp.float32)
    if activation == "gelu_new":                                   # GPT-2 tanh-approx gelu
        c = math.sqrt(2.0 / math.pi)
        y = 0.5 * y * (1.0 + jnp.tanh(c * (y + 0.044715 * (y * y * y))))
    o_ref[...] = y.astype(o_ref.dtype)


def ln_linear(x, gamma, beta, w, b, *, eps, activation=None, out_dtype=None,
              block_m=256, block_n=512):
    """LayerNorm(x) @ w + b (Conv1D) with the LN fused as a matmul prologue (full K in VMEM)."""
    M, K = x.shape
    N = w.shape[1]
    out_dtype = out_dtype or x.dtype
    tm = _pick_tile(M, block_m, 8)
    tn = _pick_tile(N, block_n, 128)
    return pl.pallas_call(
        functools.partial(_ln_linear_kernel, eps=eps, activation=activation),
        out_shape=jax.ShapeDtypeStruct((M, N), out_dtype),
        grid=(M // tm, N // tn),
        in_specs=[
            pl.BlockSpec((tm, K), lambda i, j: (i, 0)),
            pl.BlockSpec((1, K), lambda i, j: (0, 0)),
            pl.BlockSpec((1, K), lambda i, j: (0, 0)),
            pl.BlockSpec((K, tn), lambda i, j: (0, j)),
            pl.BlockSpec((1, tn), lambda i, j: (0, j)),
        ],
        out_specs=pl.BlockSpec((tm, tn), lambda i, j: (i, j)),
        compiler_params=pltpu.CompilerParams(
            dimension_semantics=("parallel", "parallel")),
    )(x, gamma.reshape(1, K), beta.reshape(1, K), w, b.reshape(1, N))


# ----------------------------------------------------------------------------- Conv1D (tiled matmul + fused epilogue)
def _linear_kernel(*refs, has_residual):
    if has_residual:
        x_ref, w_ref, b_ref, r_ref, o_ref, acc_ref = refs
    else:
        x_ref, w_ref, b_ref, o_ref, acc_ref = refs
        r_ref = None
    k = pl.program_id(2)

    @pl.when(k == 0)
    def _init():
        acc_ref[...] = jnp.zeros_like(acc_ref)

    xb = x_ref[...]
    if xb.dtype != w_ref.dtype:
        xb = xb.astype(w_ref.dtype)        # bf16 operands, f32 accumulation
    acc_ref[...] += jnp.dot(xb, w_ref[...], preferred_element_type=jnp.float32)

    @pl.when(k == pl.num_programs(2) - 1)
    def _finalize():
        y = acc_ref[...] + b_ref[...].astype(jnp.float32)
        if r_ref is not None:              # fused residual-add epilogue
            y = y + r_ref[...].astype(jnp.float32)
        o_ref[...] = y.astype(o_ref.dtype)


def linear(x, w, b, *, residual=None, out_dtype=None,
           block_m=256, block_n=512, block_k=1024):
    """Conv1D: x @ w + b (with optional fused residual add)."""
    M, K = x.shape
    N = w.shape[1]
    out_dtype = out_dtype or x.dtype
    tm = _pick_tile(M, block_m, 8)
    tn = _pick_tile(N, block_n, 128)
    tk = _pick_tile(K, block_k, 128)

    in_specs = [
        pl.BlockSpec((tm, tk), lambda i, j, k: (i, k)),
        pl.BlockSpec((tk, tn), lambda i, j, k: (k, j)),
        pl.BlockSpec((1, tn), lambda i, j, k: (0, j)),
    ]
    args = [x, w, b.reshape(1, N)]
    if residual is not None:
        in_specs.append(pl.BlockSpec((tm, tn), lambda i, j, k: (i, j)))
        args.append(residual)

    return pl.pallas_call(
        functools.partial(_linear_kernel, has_residual=residual is not None),
        out_shape=jax.ShapeDtypeStruct((M, N), out_dtype),
        grid=(M // tm, N // tn, K // tk),
        in_specs=in_specs,
        out_specs=pl.BlockSpec((tm, tn), lambda i, j, k: (i, j)),
        scratch_shapes=[pltpu.VMEM((tm, tn), jnp.float32)],
        compiler_params=pltpu.CompilerParams(
            dimension_semantics=("parallel", "parallel", "arbitrary")),
    )(*args)


# ----------------------------------------------------------------------------- Flash attention over the whole batch
def _flash_attn_kernel(segq_ref, segk_ref, q_ref, k_ref, v_ref, o_ref,
                       m_ref, l_ref, acc_ref, *, num_heads, mask_value):
    qi = pl.program_id(0)
    kv = pl.program_id(1)
    tq, D = q_ref.shape
    tk = k_ref.shape[0]
    H = num_heads
    Dh = D // H

    @pl.when(kv == 0)
    def _init():
        m_ref[...] = jnp.full(m_ref.shape, mask_value, jnp.float32)
        l_ref[...] = jnp.zeros(l_ref.shape, jnp.float32)
        acc_ref[...] = jnp.zeros(acc_ref.shape, jnp.float32)

    def _update(mask):
        # TODO(synk): for real GPT-2 head counts (H >= 12) move the head axis onto the grid
        # (or a fori_loop) instead of this static unroll, to bound vreg live ranges.
        for h in range(H):
            lo = h * Dh
            qh = q_ref[:, lo:lo + Dh]                    # softmax scale pre-folded into q
            kh = k_ref[:, lo:lo + Dh]
            vh = v_ref[:, lo:lo + Dh]
            # Contract the last dim of both operands (no transposed K copy).
            s = jax.lax.dot_general(qh, kh, (((1,), (1,)), ((), ())),
                                    preferred_element_type=jnp.float32)   # [tq, tk]
            if mask is not None:
                s = jnp.where(mask, s, mask_value)
            m_prev = m_ref[h]                            # [tq, 1]
            l_prev = l_ref[h]
            m_new = jnp.maximum(m_prev, jnp.max(s, axis=-1, keepdims=True))
            alpha = jnp.exp(m_prev - m_new)
            p = jnp.exp(s - m_new)                       # masked columns underflow to exactly 0
            l_ref[h] = alpha * l_prev + jnp.sum(p, axis=-1, keepdims=True)
            m_ref[h] = m_new
            acc_ref[h] = alpha * acc_ref[h] + jnp.dot(
                p.astype(vh.dtype), vh, preferred_element_type=jnp.float32)

    # Interior tiles (kv < qi) are always causally visible: segment mask only.
    @pl.when(kv < qi)
    def _interior():
        _update(segq_ref[...] == segk_ref[...])

    # Diagonal tile: segment mask + in-tile causal mask (tq == tk).
    @pl.when(kv == qi)
    def _diag():
        seg_mask = segq_ref[...] == segk_ref[...]
        row = jax.lax.broadcasted_iota(jnp.int32, (tq, tk), 0)
        col = jax.lax.broadcasted_iota(jnp.int32, (tq, tk), 1)
        _update(seg_mask & (row >= col))

    @pl.when(kv == pl.num_programs(1) - 1)
    def _finalize():
        for h in range(H):
            lo = h * Dh
            inv_l = pl.reciprocal(l_ref[h], approx=True)          # EUP slot, ~free
            o_ref[:, lo:lo + Dh] = (acc_ref[h] * inv_l).astype(o_ref.dtype)


def flash_attention(qkv, seg_ids, *, num_heads, block_t=128):
    """Causal self-attention over a continuous batch.

    qkv:     [T, 3*D] fused c_attn output (q | k | v along the last dim, q pre-scaled).
    seg_ids: [T] int32 sequence id per token (-1 for padding tokens).
    Returns lane-dense [T, D] with heads already merged.
    """
    Tp = qkv.shape[0]
    D = qkv.shape[1] // 3
    H = num_heads

    tq = _pick_tile(Tp, block_t, 128)
    if tq != Tp and tq % 128 != 0:     # keep the [1, T] segment-row block lane-legal
        tq = Tp
    nq = Tp // tq

    mask_value = -1e30
    seg_col = seg_ids.reshape(Tp, 1)
    seg_row = seg_ids.reshape(1, Tp)

    # Clamp the kv block index so causally-skipped (kv > qi) grid steps re-use the previously
    # fetched K/V/segment blocks instead of DMA-ing data the kernel then ignores.
    clamp = lambda qi, ki: jnp.minimum(ki, qi)

    if D % 128 == 0:
        # Read q / k / v straight out of the fused [T, 3D] tensor via column blocks.
        q_arg = k_arg = v_arg = qkv
        q_spec = pl.BlockSpec((tq, D), lambda qi, ki: (qi, 0))
        k_spec = pl.BlockSpec((tq, D), lambda qi, ki: (clamp(qi, ki), 1))
        v_spec = pl.BlockSpec((tq, D), lambda qi, ki: (clamp(qi, ki), 2))
    else:
        q_arg, k_arg, v_arg = jnp.split(qkv, 3, axis=-1)
        q_spec = pl.BlockSpec((tq, D), lambda qi, ki: (qi, 0))
        k_spec = pl.BlockSpec((tq, D), lambda qi, ki: (clamp(qi, ki), 0))
        v_spec = pl.BlockSpec((tq, D), lambda qi, ki: (clamp(qi, ki), 0))

    return pl.pallas_call(
        functools.partial(_flash_attn_kernel, num_heads=H, mask_value=mask_value),
        out_shape=jax.ShapeDtypeStruct((Tp, D), qkv.dtype),
        grid=(nq, nq),
        in_specs=[
            pl.BlockSpec((tq, 1), lambda qi, ki: (qi, 0)),
            pl.BlockSpec((1, tq), lambda qi, ki: (0, clamp(qi, ki))),
            q_spec, k_spec, v_spec,
        ],
        out_specs=pl.BlockSpec((tq, D), lambda qi, ki: (qi, 0)),
        scratch_shapes=[
            pltpu.VMEM((H, tq, 1), jnp.float32),        # running max (per head)
            pltpu.VMEM((H, tq, 1), jnp.float32),        # running sum (per head)
            pltpu.VMEM((H, tq, D // H), jnp.float32),   # per-head output accumulator
        ],
        compiler_params=pltpu.CompilerParams(
            dimension_semantics=("parallel", "arbitrary")),
    )(seg_col, seg_row, q_arg, k_arg, v_arg)


# ----------------------------------------------------------------------------- GPT2Block forward
def gpt2_block_forward(hidden_states, params, seq_lens, *, num_heads, layer_idx,
                       eps=1e-5, scale_attn_weights=True,
                       scale_attn_by_inverse_layer_idx=False,
                       compute_dtype=jnp.bfloat16):
    """hidden_states: [T, D]; seq_lens: per-sequence prompt lengths (sum == T); layer_past=None."""
    T, D = hidden_states.shape
    H = num_heads
    assert D % H == 0
    Dh = D // H

    scale = 1.0
    if scale_attn_weights:
        scale /= math.sqrt(Dh)
    if scale_attn_by_inverse_layer_idx:
        scale /= float(layer_idx + 1)

    # ---- parameter prep (would be done once at model load time in a real server):
    #   * fold the attention scale into the q columns of c_attn (removes per-head/per-kv-tile
    #     scaling from the attention inner loop; k/v cache columns untouched),
    #   * cast matmul weights to bf16 so the MXU runs at full rate with f32 accumulation.
    col_scale = jnp.concatenate([jnp.full((D,), scale, jnp.float32),
                                 jnp.ones((2 * D,), jnp.float32)])
    c_attn_w = (params['c_attn_w'] * col_scale[None, :]).astype(compute_dtype)
    c_attn_b = params['c_attn_b'] * col_scale
    c_proj_w = params['c_proj_w'].astype(compute_dtype)
    c_fc_w = params['c_fc_w'].astype(compute_dtype)
    c_mlp_proj_w = params['c_mlp_proj_w'].astype(compute_dtype)

    # ---- pad token axis to a 128 multiple; build per-token segment ids (-1 == padding)
    T_pad = ((T + 127) // 128) * 128
    seg_np = np.full((T_pad,), -1, dtype=np.int32)
    off = 0
    for sid, L in enumerate(seq_lens):
        seg_np[off:off + L] = sid
        off += L
    assert off == T
    seg_ids = jnp.asarray(seg_np)

    x = hidden_states
    if T_pad != T:
        x = jnp.pad(x, ((0, T_pad - T), (0, 0)))

    # ---- attention half: LN1 fused into c_attn, residual-add fused into c_proj
    qkv = ln_linear(x, params['ln1_g'], params['ln1_b'], c_attn_w, c_attn_b,
                    eps=eps, out_dtype=compute_dtype)                        # [T_pad, 3D] bf16
    attn = flash_attention(qkv, seg_ids, num_heads=H, block_t=128)           # [T_pad, D]  bf16
    x1 = linear(attn, c_proj_w, params['c_proj_b'],
                residual=x, out_dtype=x.dtype)                               # [T_pad, D]  f32

    # ---- MLP half: LN2 + gelu fused into c_fc, residual-add fused into the projection
    a = ln_linear(x1, params['ln2_g'], params['ln2_b'], c_fc_w, params['c_fc_b'],
                  eps=eps, activation="gelu_new", out_dtype=compute_dtype)   # [T_pad, 4D] bf16
    out = linear(a, c_mlp_proj_w, params['c_mlp_proj_b'],
                 residual=x1, out_dtype=x.dtype)                             # [T_pad, D]  f32
    # TODO(synk): nn.Dropout(resid_pdrop) omitted (eval-mode identity).
    out = out[:T]

    # ---- present_kv cache bookkeeping (JAX glue, [H, L, Dh] per sequence as in the reference);
    #      keep [T, H, Dh] views and only transpose the small per-sequence slices.
    # TODO(synk): layer_past != None (KV-cache concat before attention) not exercised here.
    k_all = qkv[:T, D:2 * D].astype(hidden_states.dtype).reshape(T, H, Dh)
    v_all = qkv[:T, 2 * D:3 * D].astype(hidden_states.dtype).reshape(T, H, Dh)
    present_kv = {}
    off = 0
    for sid, L in enumerate(seq_lens):
        present_kv[sid] = (jnp.transpose(k_all[off:off + L], (1, 0, 2)),
                           jnp.transpose(v_all[off:off + L], (1, 0, 2)))
        off += L
    return out, present_kv


# ----------------------------------------------------------------------------- setup, pure-JAX reference, run
def init_params(key, hidden, inner):
    ks = jax.random.split(key, 4)
    std = 0.02
    return {
        'ln1_g': jnp.ones((hidden,), jnp.float32),
        'ln1_b': jnp.zeros((hidden,), jnp.float32),
        'c_attn_w': std * jax.random.normal(ks[0], (hidden, 3 * hidden), jnp.float32),
        'c_attn_b': jnp.zeros((3 * hidden,), jnp.float32),
        'c_proj_w': std * jax.random.normal(ks[1], (hidden, hidden), jnp.float32),
        'c_proj_b': jnp.zeros((hidden,), jnp.float32),
        'ln2_g': jnp.ones((hidden,), jnp.float32),
        'ln2_b': jnp.zeros((hidden,), jnp.float32),
        'c_fc_w': std * jax.random.normal(ks[2], (hidden, inner), jnp.float32),
        'c_fc_b': jnp.zeros((inner,), jnp.float32),
        'c_mlp_proj_w': std * jax.random.normal(ks[3], (inner, hidden), jnp.float32),
        'c_mlp_proj_b': jnp.zeros((hidden,), jnp.float32),
    }


def _gelu_new_ref(x):
    c = math.sqrt(2.0 / math.pi)
    return 0.5 * x * (1.0 + jnp.tanh(c * (x + 0.044715 * x ** 3)))


def reference_block(x, params, seq_lens, num_heads, eps, scale):
    """Pure-JAX reference mirroring the torch GPT2Block forward (prefill path)."""
    T, D = x.shape
    H = num_heads
    Dh = D // H

    def ln(v, g, b):
        mu = jnp.mean(v, -1, keepdims=True)
        var = jnp.mean((v - mu) ** 2, -1, keepdims=True)
        return (v - mu) * jax.lax.rsqrt(var + eps) * g + b

    h = ln(x, params['ln1_g'], params['ln1_b'])
    qkv = h @ params['c_attn_w'] + params['c_attn_b']
    q, k, v = jnp.split(qkv, 3, axis=-1)
    sh = lambda t: jnp.transpose(t.reshape(T, H, Dh), (1, 0, 2))
    qh, kh, vh = sh(q), sh(k), sh(v)

    outs, off = [], 0
    for L in seq_lens:
        qs, ks, vs = qh[:, off:off + L], kh[:, off:off + L], vh[:, off:off + L]
        s = jnp.einsum('hqd,hkd->hqk', qs, ks) * scale
        causal = jnp.tril(jnp.ones((L, L), bool))
        s = jnp.where(causal[None], s, jnp.finfo(jnp.float32).min)
        p = jax.nn.softmax(s, axis=-1)
        outs.append(jnp.einsum('hqk,hkd->hqd', p, vs))
        off += L
    a = jnp.transpose(jnp.concatenate(outs, axis=1), (1, 0, 2)).reshape(T, D)
    a = a @ params['c_proj_w'] + params['c_proj_b']
    x1 = a + x
    h2 = ln(x1, params['ln2_g'], params['ln2_b'])
    ff = _gelu_new_ref(h2 @ params['c_fc_w'] + params['c_fc_b'])
    ff = ff @ params['c_mlp_proj_w'] + params['c_mlp_proj_b']
    return x1 + ff


if __name__ == "__main__":
    hidden = 256
    num_heads = 4            # head_dim = 64, like GPT-2
    inner = 4 * hidden
    seq_lens = [136, 117]    # ragged continuous batch (prefill), layer_past=None
    T = sum(seq_lens)

    key = jax.random.PRNGKey(0)
    k_x, k_p = jax.random.split(key)
    x = jax.random.normal(k_x, (T, hidden), jnp.float32)
    params = init_params(k_p, hidden, inner)

    out, present_kv = gpt2_block_forward(
        x, params, seq_lens, num_heads=num_heads, layer_idx=0,
        eps=1e-5, scale_attn_weights=True, scale_attn_by_inverse_layer_idx=False)
    jax.block_until_ready(out)
    for sid in present_kv:
        jax.block_until_ready(present_kv[sid][0])
        jax.block_until_ready(present_kv[sid][1])

    assert out.shape == (T, hidden)
    assert present_kv[0][0].shape == (num_heads, seq_lens[0], hidden // num_heads)
    assert bool(jnp.all(jnp.isfinite(out)))

    with jax.default_matmul_precision("highest"):
        ref = reference_block(x, params, seq_lens, num_heads, 1e-5,
                              1.0 / math.sqrt(hidden // num_heads))
    # bf16 MXU operands + approx softmax reciprocal -> slightly looser tolerance than pure f32.
    err = float(jnp.max(jnp.abs(out - ref)))
    assert err < 3e-2, f"kernel/reference mismatch: max abs err = {err}"

    print("KERNEL_OK")
</pallas_src>

<mosaic_0001>
module attributes {stable_mosaic.version = 11 : i64} {
  func.func @_ln_linear_kernel(%arg0: i32, %arg1: i32, %arg2: memref<256x256xf32, #tpu.memory_space<vmem>>, %arg3: memref<1x256xf32, #tpu.memory_space<vmem>>, %arg4: memref<1x256xf32, #tpu.memory_space<vmem>>, %arg5: memref<256x384xbf16, #tpu.memory_space<vmem>>, %arg6: memref<1x384xf32, #tpu.memory_space<vmem>>, %arg7: memref<256x384xbf16, #tpu.memory_space<vmem>>) attributes {dimension_semantics = [#tpu.dimension_semantics<parallel>, #tpu.dimension_semantics<parallel>], iteration_bounds = array<i64: 1, 2>, scalar_prefetch = 0 : i64, scratch_operands = 0 : i64, tpu.core_type = #tpu.core_type<tc>, window_params = [{transform_indices = @transform_0, window_bounds = array<i64: 256, 256>}, {pipeline_mode = #tpu.pipeline_mode<synchronous>, transform_indices = @transform_1, window_bounds = array<i64: 1, 256>}, {pipeline_mode = #tpu.pipeline_mode<synchronous>, transform_indices = @transform_2, window_bounds = array<i64: 1, 256>}, {transform_indices = @transform_3, window_bounds = array<i64: 256, 384>}, {transform_indices = @transform_4, window_bounds = array<i64: 1, 384>}, {transform_indices = @transform_5, window_bounds = array<i64: 256, 384>}]} {
    %c0 = arith.constant 0 : index
    %c0_0 = arith.constant 0 : index
    %0 = vector.load %arg2[%c0, %c0_0] : memref<256x256xf32, #tpu.memory_space<vmem>>, vector<256x256xf32>
    %cst = arith.constant dense<0.000000e+00> : vector<256xf32>
    %1 = vector.multi_reduction <add>, %0, %cst [1] : vector<256x256xf32> to vector<256xf32>
    %2 = vector.shape_cast %1 : vector<256xf32> to vector<256x1xf32>
    %cst_1 = arith.constant 2.560000e+02 : f32
    %3 = vector.broadcast %cst_1 : f32 to vector<256x1xf32>
    %4 = arith.divf %2, %3 : vector<256x1xf32>
    %5 = vector.broadcast %4 : vector<256x1xf32> to vector<256x256xf32>
    %6 = arith.subf %0, %5 : vector<256x256xf32>
    %7 = arith.mulf %6, %6 : vector<256x256xf32>
    %cst_2 = arith.constant dense<0.000000e+00> : vector<256xf32>
    %8 = vector.multi_reduction <add>, %7, %cst_2 [1] : vector<256x256xf32> to vector<256xf32>
    %9 = vector.shape_cast %8 : vector<256xf32> to vector<256x1xf32>
    %cst_3 = arith.constant 2.560000e+02 : f32
    %10 = vector.broadcast %cst_3 : f32 to vector<256x1xf32>
    %11 = arith.divf %9, %10 : vector<256x1xf32>
    %12 = vector.broadcast %4 : vector<256x1xf32> to vector<256x256xf32>
    %13 = arith.subf %0, %12 : vector<256x256xf32>
    %cst_4 = arith.constant 9.99999974E-6 : f32
    %14 = vector.broadcast %cst_4 : f32 to vector<256x1xf32>
    %15 = arith.addf %11, %14 : vector<256x1xf32>
    %16 = math.rsqrt %15 : vector<256x1xf32>
    %17 = vector.broadcast %16 : vector<256x1xf32> to vector<256x256xf32>
    %18 = arith.mulf %13, %17 : vector<256x256xf32>
    %c0_5 = arith.constant 0 : index
    %c0_6 = arith.constant 0 : index
    %19 = vector.load %arg3[%c0_5, %c0_6] : memref<1x256xf32, #tpu.memory_space<vmem>>, vector<1x256xf32>
    %20 = vector.broadcast %19 : vector<1x256xf32> to vector<256x256xf32>
    %21 = arith.mulf %18, %20 : vector<256x256xf32>
    %c0_7 = arith.constant 0 : index
    %c0_8 = arith.constant 0 : index
    %22 = vector.load %arg4[%c0_7, %c0_8] : memref<1x256xf32, #tpu.memory_space<vmem>>, vector<1x256xf32>
    %23 = vector.broadcast %22 : vector<1x256xf32> to vector<256x256xf32>
    %24 = arith.addf %21, %23 : vector<256x256xf32>
    %25 = arith.truncf %24 : vector<256x256xf32> to vector<256x256xbf16>
    %c0_9 = arith.constant 0 : index
    %c0_10 = arith.constant 0 : index
    %26 = vector.load %arg5[%c0_9, %c0_10] : memref<256x384xbf16, #tpu.memory_space<vmem>>, vector<256x384xbf16>
    %cst_11 = arith.constant dense<0.000000e+00> : vector<256x384xf32>
    %27 = tpu.matmul %25, %26, %cst_11 {dimension_numbers = #tpu.dot_dimension_numbers<[1], [0], [0], [1], [0, 0, 1, 1], [], []>} : vector<256x256xbf16>, vector<256x384xbf16>, vector<256x384xf32> -> vector<256x384xf32>
    %c0_12 = arith.constant 0 : index
    %c0_13 = arith.constant 0 : index
    %28 = vector.load %arg6[%c0_12, %c0_13] : memref<1x384xf32, #tpu.memory_space<vmem>>, vector<1x384xf32>
    %29 = vector.broadcast %28 : vector<1x384xf32> to vector<256x384xf32>
    %30 = arith.addf %27, %29 : vector<256x384xf32>
    %31 = arith.truncf %30 : vector<256x384xf32> to vector<256x384xbf16>
    %c0_14 = arith.constant 0 : index
    %c0_15 = arith.constant 0 : index
    %32 = vector.load %arg7[%c0_14, %c0_15] : memref<256x384xbf16, #tpu.memory_space<vmem>>, vector<256x384xbf16>
    tpu.vector_store %arg7[%c0_14, %c0_15], %31 {strides = array<i32>} : memref<256x384xbf16, #tpu.memory_space<vmem>>, vector<256x384xbf16>,
    return
  }
  func.func @transform_0(%arg0: i32, %arg1: i32) -> (i32, i32) {
    %c0_i32 = arith.constant 0 : i32
    %c0_i32_0 = arith.constant 0 : i32
    return %arg0, %c0_i32 : i32, i32
  }
  func.func @transform_1(%arg0: i32, %arg1: i32) -> (i32, i32) {
    %c0_i32 = arith.constant 0 : i32
    %c0_i32_0 = arith.constant 0 : i32
    %c0_i32_1 = arith.constant 0 : i32
    return %c0_i32, %c0_i32_0 : i32, i32
  }
  func.func @transform_2(%arg0: i32, %arg1: i32) -> (i32, i32) {
    %c0_i32 = arith.constant 0 : i32
    %c0_i32_0 = arith.constant 0 : i32
    %c0_i32_1 = arith.constant 0 : i32
    return %c0_i32, %c0_i32_0 : i32, i32
  }
  func.func @transform_3(%arg0: i32, %arg1: i32) -> (i32, i32) {
    %c0_i32 = arith.constant 0 : i32
    %c0_i32_0 = arith.constant 0 : i32
    return %c0_i32, %arg1 : i32, i32
  }
  func.func @transform_4(%arg0: i32, %arg1: i32) -> (i32, i32) {
    %c0_i32 = arith.constant 0 : i32
    %c0_i32_0 = arith.constant 0 : i32
    return %c0_i32, %arg1 : i32, i32
  }
  func.func @transform_5(%arg0: i32, %arg1: i32) -> (i32, i32) {
    %c0_i32 = arith.constant 0 : i32
    return %arg0, %arg1 : i32, i32
  }
}

</mosaic_0001>

<llo_original>
// kernel: tpu_custom_call.1
$region0: #{tpu_custom_call.1}
  #allocation0 [shape = 'u32[]', space=smem, size = 0x4, offset = 0x4, fixed_abs, tag = 'smem constant byte address 0x4 - core index']
  #allocation1 [shape = 'u32[144,128]{1,0:T(1,128)}', space=vmem, size = 0x12000, scoped, tag = 'internal scratch']
  %s0 = inlined_call_operand.hbm [shape: f32[256,256], index: 0, kind: input, shape index: {}]
  %s1 = inlined_call_operand.vmem [shape: f32[1,256], index: 1, kind: input, shape index: {}]
  %s2 = inlined_call_operand.vmem [shape: f32[1,256], index: 2, kind: input, shape index: {}]
  %s3 = inlined_call_operand.hbm [shape: bf16[256,768], index: 3, kind: input, shape index: {}]
  %s4 = inlined_call_operand.vmem [shape: f32[1,768], index: 4, kind: input, shape index: {}]
  %s5 = inlined_call_operand.hbm [shape: bf16[256,768], index: 5, kind: output, shape index: {}]
  %s6 = sld [smem:[#allocation0]]
  $region61: #{tpu_custom_call.1} parent=0
    _
  %s8 = ssub.s32 1, %s6
  %s9 = scalar_select 0, %s8, %s6
  $region1: #{tpu_custom_call.1} parent=0
    #allocation2 [shape = 'u8[262144]{0}', space=vmem, size = 0x40000, scoped, tag = 'input window, operand 0, single buffered']
    #allocation3 [shape = 's32[2]{0}', space=sflag, size = 0x8, scoped, tag = 'scoped memory for tpu_custom_call.1']
    #allocation4 [shape = 's32[2]{0}', space=sflag, size = 0x8, scoped, tag = 'scoped memory for tpu_custom_call.1']
    #allocation5 [shape = 'u8[393216]{0}', space=vmem, size = 0x60000, scoped, tag = 'input window, operand 3']
    #allocation6 [shape = 's32[2]{0}', space=sflag, size = 0x8, scoped, tag = 'scoped memory for tpu_custom_call.1']
    #allocation7 [shape = 'u8[393216]{0}', space=vmem, size = 0x60000, scoped, tag = 'output window, operand 0']
    %10 = vsyncpa [#allocation3], 0
    %11 = vsyncpa [#allocation6], 0
    %s12 = scalar_lea.sflag [#allocation6], 1
    %13 = vsyncpa %s12, 0
    %14 = vsyncpa [#allocation4], 0
    %s15 = scalar_lea.sflag [#allocation4], 1
    %16 = vsyncpa %s15, 0
    loop: start=0, step=1, limit=4
    $region2: #{tpu_custom_call.1} parent=1 // loop_pre_header
      _
    $region3: #{tpu_custom_call.1} parent=1 // loop_header
      %s18 = sphi 0, %s22
      %p19 = scmp.ge.s32.totalorder %s18, 4
      %s25 = sphi 0, %s37
      %s26 = sphi 0, %s33
      %s27 = sphi 0, %s25
      %s28 = sphi 0, %s26
      %s29 = sphi 0, %s27
      %s30 = sphi 0, %s28
      %s40 = sphi 0, %s42
      %s43 = sphi 0, %s40
      %s44 = sphi 0, %s43
      %s60 = sphi 0, %s44
      %s64 = sphi 0, %s64
      %s66 = sphi 0, %s64
      %s67 = sphi 0, %s66
      %s81 = sphi 0, %s67
      %s85 = sphi 0, %s85
      %s87 = sphi 0, %s85
      %s88 = sphi 0, %s87
      %s102 = sphi 0, %s88
      %s108 = sphi 0, %s110
      %s111 = sphi 0, %s108
      %s112 = sphi 0, %s111
      %s128 = sphi 0, %s112
      %s134 = sphi 0, %s136
      %s137 = sphi 0, %s134
      %s138 = sphi 0, %s137
      %s154 = sphi 0, %s138
      %s162 = sphi 0, %s164
      %s165 = sphi 0, %s162
      %s166 = sphi 0, %s165
      %s182 = sphi 0, %s166
    $region4: #{tpu_custom_call.1} parent=1 // loop_header_branch
      %21 = sbr.rel (%p19) target = $region8
    $region5: #{tpu_custom_call.1} parent=1 // loop_body
      %s23 = ssub.s32 %s18, 1
      %s24 = ssub.s32 %s18, 2
      %s31 = sadd.s32 1, %s26
      %p32 = scmp.ge.s32.totalorder %s31, 2
      %s33 = scalar_select %p32, 0, %s31
      %s34 = sadd.s32 1, %s25
      %s35 = scalar_select %p32, %s34, %s25
      %p36 = scmp.ge.s32.totalorder %s35, 1
      %s37 = scalar_select %p36, 0, %s35
      %s38 = ssub.s32 %s25, %s37
      %p39 = scmp.eq.s32.totalorder %s38, 0
      %s41 = sadd.s32 %s40, 1
      %s42 = scalar_select %p39, %s40, %s41
      %p45 = pneg %p39
      %p46 = scmp.eq.s32.totalorder %s18, 1
      %p47 = por %p45, %p46
      %p48 = scmp.ne.s32.totalorder %s40, %s43
      %p49 = scmp.eq.s32.totalorder %s18, 0
      %p50 = por %p48, %p49
      %p51 = scmp.ne.s32.totalorder %s40, %s43
      %p52 = scmp.eq.s32.totalorder %s23, 1
      %p53 = por %p51, %p52
      %p54 = scmp.ne.s32.totalorder %s43, %s44
      %p55 = scmp.eq.s32.totalorder %s23, 0
      %p56 = por %p54, %p55
      %p57 = scmp.ne.s32.totalorder %s43, %s44
      %p58 = scmp.eq.s32.totalorder %s24, 1
      %p59 = por %p57, %p58
      %p61 = scmp.ne.s32.totalorder %s44, %s60
      %p62 = scmp.eq.s32.totalorder %s24, 0
      %p63 = por %p61, %p62
      %s65 = sadd.s32 %s64, 1
      %p68 = scmp.eq.s32.totalorder %s18, 1
      %p69 = scmp.ne.s32.totalorder %s64, %s66
      %p70 = scmp.eq.s32.totalorder %s18, 0
      %p71 = por %p69, %p70
      %p72 = scmp.ne.s32.totalorder %s64, %s66
      %p73 = scmp.eq.s32.totalorder %s23, 1
      %p74 = por %p72, %p73
      %p75 = scmp.ne.s32.totalorder %s66, %s67
      %p76 = scmp.eq.s32.totalorder %s23, 0
      %p77 = por %p75, %p76
      %p78 = scmp.ne.s32.totalorder %s66, %s67
      %p79 = scmp.eq.s32.totalorder %s24, 1
      %p80 = por %p78, %p79
      %p82 = scmp.ne.s32.totalorder %s67, %s81
      %p83 = scmp.eq.s32.totalorder %s24, 0
      %p84 = por %p82, %p83
      %s86 = sadd.s32 %s85, 1
      %p89 = scmp.eq.s32.totalorder %s18, 1
      %p90 = scmp.ne.s32.totalorder %s85, %s87
      %p91 = scmp.eq.s32.totalorder %s18, 0
      %p92 = por %p90, %p91
      %p93 = scmp.ne.s32.totalorder %s85, %s87
      %p94 = scmp.eq.s32.totalorder %s23, 1
      %p95 = por %p93, %p94
      %p96 = scmp.ne.s32.totalorder %s87, %s88
      %p97 = scmp.eq.s32.totalorder %s23, 0
      %p98 = por %p96, %p97
      %p99 = scmp.ne.s32.totalorder %s87, %s88
      %p100 = scmp.eq.s32.totalorder %s24, 1
      %p101 = por %p99, %p100
      %p103 = scmp.ne.s32.totalorder %s88, %s102
      %p104 = scmp.eq.s32.totalorder %s24, 0
      %p105 = por %p103, %p104
      %s106 = ssub.s32 %s26, %s33
      %p107 = scmp.eq.s32.totalorder %s106, 0
      %s109 = sadd.s32 %s108, 1
      %s110 = scalar_select %p107, %s108, %s109
      %p113 = pneg %p107
      %p114 = scmp.eq.s32.totalorder %s18, 1
      %p115 = por %p113, %p114
      %p116 = scmp.ne.s32.totalorder %s108, %s111
      %p117 = scmp.eq.s32.totalorder %s18, 0
      %p118 = por %p116, %p117
      %p119 = scmp.ne.s32.totalorder %s108, %s111
      %p120 = scmp.eq.s32.totalorder %s23, 1
      %p121 = por %p119, %p120
      %p122 = scmp.ne.s32.totalorder %s111, %s112
      %p123 = scmp.eq.s32.totalorder %s23, 0
      %p124 = por %p122, %p123
      %p125 = scmp.ne.s32.totalorder %s111, %s112
      %p126 = scmp.eq.s32.totalorder %s24, 1
      %p127 = por %p125, %p126
      %p129 = scmp.ne.s32.totalorder %s112, %s128
      %p130 = scmp.eq.s32.totalorder %s24, 0
      %p131 = por %p129, %p130
      %s132 = ssub.s32 %s26, %s33
      %p133 = scmp.eq.s32.totalorder %s132, 0
      %s135 = sadd.s32 %s134, 1
      %s136 = scalar_select %p133, %s134, %s135
      %p139 = pneg %p133
      %p140 = scmp.eq.s32.totalorder %s18, 1
      %p141 = por %p139, %p140
      %p142 = scmp.ne.s32.totalorder %s134, %s137
      %p143 = scmp.eq.s32.totalorder %s18, 0
      %p144 = por %p142, %p143
      %p145 = scmp.ne.s32.totalorder %s134, %s137
      %p146 = scmp.eq.s32.totalorder %s23, 1
      %p147 = por %p145, %p146
      %p148 = scmp.ne.s32.totalorder %s137, %s138
      %p149 = scmp.eq.s32.totalorder %s23, 0
      %p150 = por %p148, %p149
      %p151 = scmp.ne.s32.totalorder %s137, %s138
      %p152 = scmp.eq.s32.totalorder %s24, 1
      %p153 = por %p151, %p152
      %p155 = scmp.ne.s32.totalorder %s138, %s154
      %p156 = scmp.eq.s32.totalorder %s24, 0
      %p157 = por %p155, %p156
      %s158 = ssub.s32 %s25, %s37
      %s159 = ssub.s32 %s26, %s33
      %s160 = sor.u32 %s158, %s159
      %p161 = scmp.eq.s32.totalorder %s160, 0
      %s163 = sadd.s32 %s162, 1
      %s164 = scalar_select %p161, %s162, %s163
      %p167 = pneg %p161
      %p168 = scmp.eq.s32.totalorder %s18, 1
      %p169 = por %p167, %p168
      %p170 = scmp.ne.s32.totalorder %s162, %s165
      %p171 = scmp.eq.s32.totalorder %s18, 0
      %p172 = por %p170, %p171
      %p173 = scmp.ne.s32.totalorder %s162, %s165
      %p174 = scmp.eq.s32.totalorder %s23, 1
      %p175 = por %p173, %p174
      %p176 = scmp.ne.s32.totalorder %s165, %s166
      %p177 = scmp.eq.s32.totalorder %s23, 0
      %p178 = por %p176, %p177
      %p179 = scmp.ne.s32.totalorder %s165, %s166
      %p180 = scmp.eq.s32.totalorder %s24, 1
      %p181 = por %p179, %p180
      %p183 = scmp.ne.s32.totalorder %s166, %s182
      %p184 = scmp.eq.s32.totalorder %s24, 0
      %p185 = por %p183, %p184
      %p186 = scmp.le.s32.totalorder 1, %s18
      %p187 = scmp.lt.s32.totalorder %s18, 3
      %p188 = pnand %p186, %p187
      %p189 = pneg %p188
      // Predicated region
      $region9: #{tpu_custom_call.1} parent=5 // pred_check
        _
      $region10: #{tpu_custom_call.1} parent=5 // pred_check_branch
        %191 = sbr.rel (%p188) target = $region12
      $region11: #{tpu_custom_call.1} parent=5 // pred_region
        %s192 = ssub.s32 %s18, 1
        // Predicated region
        $region13: #{tpu_custom_call.1} parent=11 // pred_check
          %p193 = pneg %p56
        $region14: #{tpu_custom_call.1} parent=11 // pred_check_branch
          %195 = sbr.rel (%p193) target = $region16
        $region15: #{tpu_custom_call.1} parent=11 // pred_region
          %s196 = smul.u32 32, %s27
          %s198 = ssub.s32 8192, 8192
          %199 = vsyncadd [#allocation3], %s198
          %s200 = smul.addr %s196, 2
          %s201 = smul.addr %s200, 128
          %s202 = scalar_lea.hbm %s0, %s201
          %s203 = sshll.u32 [#allocation2], 4
          %s204 = int_to_ptr.vmem [resolvable:$true] %s203
          %209 = dma.hbm_to_vmem [thread:$0]  %s202, 8192, %s204, [#allocation3], 256, 256, 16
        $region16: #{tpu_custom_call.1} parent=11 // pred_fallthru
          _
        // Predicated region
        $region17: #{tpu_custom_call.1} parent=11 // pred_check
          %p210 = pneg %p77
        $region18: #{tpu_custom_call.1} parent=11 // pred_check_branch
          %212 = sbr.rel (%p210) target = $region20
        $region19: #{tpu_custom_call.1} parent=11 // pred_region
          _
        $region20: #{tpu_custom_call.1} parent=11 // pred_fallthru
          _
        // Predicated region
        $region21: #{tpu_custom_call.1} parent=11 // pred_check
          %p213 = pneg %p98
        $region22: #{tpu_custom_call.1} parent=11 // pred_check_branch
          %215 = sbr.rel (%p213) target = $region24
        $region23: #{tpu_custom_call.1} parent=11 // pred_region
          _
        $region24: #{tpu_custom_call.1} parent=11 // pred_fallthru
          _
      $region12: #{tpu_custom_call.1} parent=5 // pred_fallthru
        _
      %p216 = scmp.lt.s32.totalorder %s18, 2
      // Predicated region
      $region25: #{tpu_custom_call.1} parent=5 // pred_check
        %p217 = pneg %p216
      $region26: #{tpu_custom_call.1} parent=5 // pred_check_branch
        %219 = sbr.rel (%p217) target = $region28
      $region27: #{tpu_custom_call.1} parent=5 // pred_region
        // Predicated region
        $region29: #{tpu_custom_call.1} parent=27 // pred_check
          %p220 = pneg %p118
        $region30: #{tpu_custom_call.1} parent=27 // pred_check_branch
          %222 = sbr.rel (%p220) target = $region32
        $region31: #{tpu_custom_call.1} parent=27 // pred_region
          %s223 = sand.u32 %s108, 1
          %s224 = scalar_lea.sflag [#allocation6], %s223
          %s225 = sand.u32 %s108, 1
          %s226 = smul.addr %s225, 384
          %s227 = scalar_lea.vmem [#allocation5], %s226
          %s228 = smul.u32 3, %s26
          %s230 = ssub.s32 6144, 6144
          %231 = vsyncadd %s224, %s230
          %s232 = smul.addr %s228, 64
          %s233 = scalar_lea.hbm %s3, %s232
          %s234 = sshll.u32 %s227, 4
          %s235 = int_to_ptr.vmem [resolvable:$true] %s234
          %240 = dma.hbm_to_vmem [thread:$0]  %s233, 6144, %s235, %s224, 384, 192, 12
        $region32: #{tpu_custom_call.1} parent=27 // pred_fallthru
          _
        // Predicated region
        $region33: #{tpu_custom_call.1} parent=27 // pred_check
          %p241 = pneg %p144
        $region34: #{tpu_custom_call.1} parent=27 // pred_check_branch
          %243 = sbr.rel (%p241) target = $region36
        $region35: #{tpu_custom_call.1} parent=27 // pred_region
          %s244 = smul.u32 3, %s26
          %p245 = scmp.lt.s32.totalorder %s244, 5
          %s246 = scalar_select %p245, %s244, 5
          %s247 = scalar_lea.vmem %s4, %s246
          %s248 = smul.u32 3, %s26
        $region36: #{tpu_custom_call.1} parent=27 // pred_fallthru
          _
      $region28: #{tpu_custom_call.1} parent=5 // pred_fallthru
        _
      %p249 = scmp.le.s32.totalorder 1, %s18
      %p250 = scmp.lt.s32.totalorder %s18, 3
      %p251 = pnand %p249, %p250
      %p252 = pneg %p251
      // Predicated region
      $region37: #{tpu_custom_call.1} parent=5 // pred_check
        _
      $region38: #{tpu_custom_call.1} parent=5 // pred_check_branch
        %254 = sbr.rel (%p251) target = $region40
      $region39: #{tpu_custom_call.1} parent=5 // pred_region
        %s255 = ssub.s32 %s18, 1
        // Predicated region
        $region41: #{tpu_custom_call.1} parent=39 // pred_check
          %p256 = pneg %p56
        $region42: #{tpu_custom_call.1} parent=39 // pred_check_branch
          %258 = sbr.rel (%p256) target = $region44
        $region43: #{tpu_custom_call.1} parent=39 // pred_region
          %259 = dma.done [#allocation3], 8192
        $region44: #{tpu_custom_call.1} parent=39 // pred_fallthru
          _
        %s260 = sand.u32 %s111, 1
        %s261 = scalar_lea.sflag [#allocation6], %s260
        %s262 = sand.u32 %s111, 1
        %s263 = smul.addr %s262, 384
        %s264 = scalar_lea.vmem [#allocation5], %s263
        // Predicated region
        $region45: #{tpu_custom_call.1} parent=39 // pred_check
          %p265 = pneg %p124
        $region46: #{tpu_custom_call.1} parent=39 // pred_check_branch
          %267 = sbr.rel (%p265) target = $region48
        $region47: #{tpu_custom_call.1} parent=39 // pred_region
          %268 = dma.done %s261, 6144
        $region48: #{tpu_custom_call.1} parent=39 // pred_fallthru
          _
        %p269 = pneg %p56
        %p270 = pneg %p53
        %p271 = pneg %p77
        %p272 = pneg %p74
        %p273 = pneg %p98
        %p274 = pneg %p95
        %s275 = sand.u32 %s111, 1
        %s276 = scalar_lea.sflag [#allocation6], %s275
        %s277 = sand.u32 %s111, 1
        %s278 = smul.addr %s277, 384
        %s279 = scalar_lea.vmem [#allocation5], %s278
        %p280 = pneg %p124
        %p281 = pneg %p121
        %s282 = smul.u32 3, %s28
        %p283 = scmp.lt.s32.totalorder %s282, 5
        %s284 = scalar_select %p283, %s282, 5
        %s285 = scalar_lea.vmem %s4, %s284
        %p286 = pneg %p150
        %p287 = pneg %p147
        %p288 = pneg %p178
        %p289 = pneg %p175
        %s290 = sand.u32 %s165, 1
        %s291 = scalar_lea.sflag [#allocation4], %s290
        %s292 = sand.u32 %s165, 1
        %s293 = smul.addr %s292, 384
        %s294 = scalar_lea.vmem [#allocation7], %s293
        %s295 = smul.u32 32, %s27
        %s296 = smul.u32 3, %s28
        %s297 = smul.u32 3, %s28
        %p298 = scmp.lt.s32.totalorder %s297, 5
        %s299 = scalar_select %p298, %s297, 5
        %s300 = scalar_lea.vmem %s4, %s299
        %s301 = smul.u32 3, %s28
        %s302 = smul.u32 32, %s27
        %s303 = smul.u32 3, %s28
        %v305 = vld [vmem:[#allocation2] sm:$0xff]
        %v306 = vld [vmem:[#allocation2 + $0x8] sm:$0xff]
        %v307 = vld [vmem:[#allocation2 + $0x10] sm:$0xff]
        %v308 = vld [vmem:[#allocation2 + $0x18] sm:$0xff]
        %v309 = vld [vmem:[#allocation2 + $0x20] sm:$0xff]
        %v310 = vld [vmem:[#allocation2 + $0x28] sm:$0xff]
        %v311 = vld [vmem:[#allocation2 + $0x30] sm:$0xff]
        %v312 = vld [vmem:[#allocation2 + $0x38] sm:$0xff]
        %v313 = vld [vmem:[#allocation2 + $0x40] sm:$0xff]
        %v314 = vld [vmem:[#allocation2 + $0x48] sm:$0xff]
        %v315 = vld [vmem:[#allocation2 + $0x50] sm:$0xff]
        %v316 = vld [vmem:[#allocation2 + $0x58] sm:$0xff]
        %v317 = vld [vmem:[#allocation2 + $0x60] sm:$0xff]
        %v318 = vld [vmem:[#allocation2 + $0x68] sm:$0xff]
        %v319 = vld [vmem:[#allocation2 + $0x70] sm:$0xff]
        %v320 = vld [vmem:[#allocation2 + $0x78] sm:$0xff]
        %v321 = vld [vmem:[#allocation2 + $0x80] sm:$0xff]
        %v322 = vld [vmem:[#allocation2 + $0x88] sm:$0xff]
        %v323 = vld [vmem:[#allocation2 + $0x90] sm:$0xff]
        %v324 = vld [vmem:[#allocation2 + $0x98] sm:$0xff]
        %v325 = vld [vmem:[#allocation2 + $0xa0] sm:$0xff]
        %v326 = vld [vmem:[#allocation2 + $0xa8] sm:$0xff]
        %v327 = vld [vmem:[#allocation2 + $0xb0] sm:$0xff]
        %v328 = vld [vmem:[#allocation2 + $0xb8] sm:$0xff]
        %v329 = vld [vmem:[#allocation2 + $0xc0] sm:$0xff]
        %v330 = vld [vmem:[#allocation2 + $0xc8] sm:$0xff]
        %v331 = vld [vmem:[#allocation2 + $0xd0] sm:$0xff]
        %v332 = vld [vmem:[#allocation2 + $0xd8] sm:$0xff]
        %v333 = vld [vmem:[#allocation2 + $0xe0] sm:$0xff]
        %v334 = vld [vmem:[#allocation2 + $0xe8] sm:$0xff]
        %v335 = vld [vmem:[#allocation2 + $0xf0] sm:$0xff]
        %v336 = vld [vmem:[#allocation2 + $0xf8] sm:$0xff]
        %v337 = vld [vmem:[#allocation2 + $0x100] sm:$0xff]
        %v338 = vld [vmem:[#allocation2 + $0x108] sm:$0xff]
        %v339 = vld [vmem:[#allocation2 + $0x110] sm:$0xff]
        %v340 = vld [vmem:[#allocation2 + $0x118] sm:$0xff]
        %v341 = vld [vmem:[#allocation2 + $0x120] sm:$0xff]
        %v342 = vld [vmem:[#allocation2 + $0x128] sm:$0xff]
        %v343 = vld [vmem:[#allocation2 + $0x130] sm:$0xff]
        %v344 = vld [vmem:[#allocation2 + $0x138] sm:$0xff]
        %v345 = vld [vmem:[#allocation2 + $0x140] sm:$0xff]
        %v346 = vld [vmem:[#allocation2 + $0x148] sm:$0xff]
        %v347 = vld [vmem:[#allocation2 + $0x150] sm:$0xff]
        %v348 = vld [vmem:[#allocation2 + $0x158] sm:$0xff]
        %v349 = vld [vmem:[#allocation2 + $0x160] sm:$0xff]
        %v350 = vld [vmem:[#allocation2 + $0x168] sm:$0xff]
        %v351 = vld [vmem:[#allocation2 + $0x170] sm:$0xff]
        %v352 = vld [vmem:[#allocation2 + $0x178] sm:$0xff]
        %v353 = vld [vmem:[#allocation2 + $0x180] sm:$0xff]
        %v354 = vld [vmem:[#allocation2 + $0x188] sm:$0xff]
        %v355 = vld [vmem:[#allocation2 + $0x190] sm:$0xff]
        %v356 = vld [vmem:[#allocation2 + $0x198] sm:$0xff]
        %v357 = vld [vmem:[#allocation2 + $0x1a0] sm:$0xff]
        %v358 = vld [vmem:[#allocation2 + $0x1a8] sm:$0xff]
        %v359 = vld [vmem:[#allocation2 + $0x1b0] sm:$0xff]
        %v360 = vld [vmem:[#allocation2 + $0x1b8] sm:$0xff]
        %v361 = vld [vmem:[#allocation2 + $0x1c0] sm:$0xff]
        %v362 = vld [vmem:[#allocation2 + $0x1c8] sm:$0xff]
        %v363 = vld [vmem:[#allocation2 + $0x1d0] sm:$0xff]
        %v364 = vld [vmem:[#allocation2 + $0x1d8] sm:$0xff]
        %v365 = vld [vmem:[#allocation2 + $0x1e0] sm:$0xff]
        %v366 = vld [vmem:[#allocation2 + $0x1e8] sm:$0xff]
        %v367 = vld [vmem:[#allocation2 + $0x1f0] sm:$0xff]
        %v368 = vld [vmem:[#allocation2 + $0x1f8] sm:$0xff]
        %v369 = vadd.f32 %v305, %v306
        %370 = vadd.xlane.f32.xlu0 %v369
        %v371 = vpop.xlane.xlu0 %370
        %v372 = vadd.f32 %v307, %v308
        %373 = vadd.xlane.f32.xlu0 %v372
        %v374 = vpop.xlane.xlu0 %373
        %v375 = vadd.f32 %v309, %v310
        %376 = vadd.xlane.f32.xlu0 %v375
        %v377 = vpop.xlane.xlu0 %376
        %v378 = vadd.f32 %v311, %v312
        %379 = vadd.xlane.f32.xlu0 %v378
        %v380 = vpop.xlane.xlu0 %379
        %v381 = vadd.f32 %v313, %v314
        %382 = vadd.xlane.f32.xlu0 %v381
        %v383 = vpop.xlane.xlu0 %382
        %v384 = vadd.f32 %v315, %v316
        %385 = vadd.xlane.f32.xlu0 %v384
        %v386 = vpop.xlane.xlu0 %385
        %v387 = vadd.f32 %v317, %v318
        %388 = vadd.xlane.f32.xlu0 %v387
        %v389 = vpop.xlane.xlu0 %388
        %v390 = vadd.f32 %v319, %v320
        %391 = vadd.xlane.f32.xlu0 %v390
        %v392 = vpop.xlane.xlu0 %391
        %v393 = vadd.f32 %v321, %v322
        %394 = vadd.xlane.f32.xlu0 %v393
        %v395 = vpop.xlane.xlu0 %394
        %v396 = vadd.f32 %v323, %v324
        %397 = vadd.xlane.f32.xlu0 %v396
        %v398 = vpop.xlane.xlu0 %397
        %v399 = vadd.f32 %v325, %v326
        %400 = vadd.xlane.f32.xlu0 %v399
        %v401 = vpop.xlane.xlu0 %400
        %v402 = vadd.f32 %v327, %v328
        %403 = vadd.xlane.f32.xlu0 %v402
        %v404 = vpop.xlane.xlu0 %403
        %v405 = vadd.f32 %v329, %v330
        %406 = vadd.xlane.f32.xlu0 %v405
        %v407 = vpop.xlane.xlu0 %406
        %v408 = vadd.f32 %v331, %v332
        %409 = vadd.xlane.f32.xlu0 %v408
        %v410 = vpop.xlane.xlu0 %409
        %v411 = vadd.f32 %v333, %v334
        %412 = vadd.xlane.f32.xlu0 %v411
        %v413 = vpop.xlane.xlu0 %412
        %v414 = vadd.f32 %v335, %v336
        %415 = vadd.xlane.f32.xlu0 %v414
        %v416 = vpop.xlane.xlu0 %415
        %v417 = vadd.f32 %v337, %v338
        %418 = vadd.xlane.f32.xlu0 %v417
        %v419 = vpop.xlane.xlu0 %418
        %v420 = vadd.f32 %v339, %v340
        %421 = vadd.xlane.f32.xlu0 %v420
        %v422 = vpop.xlane.xlu0 %421
        %v423 = vadd.f32 %v341, %v342
        %424 = vadd.xlane.f32.xlu0 %v423
        %v425 = vpop.xlane.xlu0 %424
        %v426 = vadd.f32 %v343, %v344
        %427 = vadd.xlane.f32.xlu0 %v426
        %v428 = vpop.xlane.xlu0 %427
        %v429 = vadd.f32 %v345, %v346
        %430 = vadd.xlane.f32.xlu0 %v429
        %v431 = vpop.xlane.xlu0 %430
        %v432 = vadd.f32 %v347, %v348
        %433 = vadd.xlane.f32.xlu0 %v432
        %v434 = vpop.xlane.xlu0 %433
        %v435 = vadd.f32 %v349, %v350
        %436 = vadd.xlane.f32.xlu0 %v435
        %v437 = vpop.xlane.xlu0 %436
        %v438 = vadd.f32 %v351, %v352
        %439 = vadd.xlane.f32.xlu0 %v438
        %v440 = vpop.xlane.xlu0 %439
        %v441 = vadd.f32 %v353, %v354
        %442 = vadd.xlane.f32.xlu0 %v441
        %v443 = vpop.xlane.xlu0 %442
        %v444 = vadd.f32 %v355, %v356
        %445 = vadd.xlane.f32.xlu0 %v444
        %v446 = vpop.xlane.xlu0 %445
        %v447 = vadd.f32 %v357, %v358
        %448 = vadd.xlane.f32.xlu0 %v447
        %v449 = vpop.xlane.xlu0 %448
        %v450 = vadd.f32 %v359, %v360
        %451 = vadd.xlane.f32.xlu0 %v450
        %v452 = vpop.xlane.xlu0 %451
        %v453 = vadd.f32 %v361, %v362
        %454 = vadd.xlane.f32.xlu0 %v453
        %v455 = vpop.xlane.xlu0 %454
        %v456 = vadd.f32 %v363, %v364
        %457 = vadd.xlane.f32.xlu0 %v456
        %v458 = vpop.xlane.xlu0 %457
        %v459 = vadd.f32 %v365, %v366
        %460 = vadd.xlane.f32.xlu0 %v459
        %v461 = vpop.xlane.xlu0 %460
        %v462 = vadd.f32 %v367, %v368
        %463 = vadd.xlane.f32.xlu0 %v462
        %v464 = vpop.xlane.xlu0 %463
        %v465 = vrcp.pop 256.0
        %v466 = vmul.f32 %v371, %v465
        %v467 = vmul.f32 %v374, %v465
        %v468 = vmul.f32 %v377, %v465
        %v469 = vmul.f32 %v380, %v465
        %v470 = vmul.f32 %v383, %v465
        %v471 = vmul.f32 %v386, %v465
        %v472 = vmul.f32 %v389, %v465
        %v473 = vmul.f32 %v392, %v465
        %v474 = vmul.f32 %v395, %v465
        %v475 = vmul.f32 %v398, %v465
        %v476 = vmul.f32 %v401, %v465
        %v477 = vmul.f32 %v404, %v465
        %v478 = vmul.f32 %v407, %v465
        %v479 = vmul.f32 %v410, %v465
        %v480 = vmul.f32 %v413, %v465
        %v481 = vmul.f32 %v416, %v465
        %v482 = vmul.f32 %v419, %v465
        %v483 = vmul.f32 %v422, %v465
        %v484 = vmul.f32 %v425, %v465
        %v485 = vmul.f32 %v428, %v465
        %v486 = vmul.f32 %v431, %v465
        %v487 = vmul.f32 %v434, %v465
        %v488 = vmul.f32 %v437, %v465
        %v489 = vmul.f32 %v440, %v465
        %v490 = vmul.f32 %v443, %v465
        %v491 = vmul.f32 %v446, %v465
        %v492 = vmul.f32 %v449, %v465
        %v493 = vmul.f32 %v452, %v465
        %v494 = vmul.f32 %v455, %v465
        %v495 = vmul.f32 %v458, %v465
        %v496 = vmul.f32 %v461, %v465
        %v497 = vmul.f32 %v464, %v465
        %v498 = vsub.f32 %v305, %v466
        %v499 = vsub.f32 %v306, %v466
        %v500 = vsub.f32 %v307, %v467
        %v501 = vsub.f32 %v308, %v467
        %v502 = vsub.f32 %v309, %v468
        %v503 = vsub.f32 %v310, %v468
        %v504 = vsub.f32 %v311, %v469
        %v505 = vsub.f32 %v312, %v469
        %v506 = vsub.f32 %v313, %v470
        %v507 = vsub.f32 %v314, %v470
        %v508 = vsub.f32 %v315, %v471
        %v509 = vsub.f32 %v316, %v471
        %v510 = vsub.f32 %v317, %v472
        %v511 = vsub.f32 %v318, %v472
        %v512 = vsub.f32 %v319, %v473
        %v513 = vsub.f32 %v320, %v473
        %v514 = vsub.f32 %v321, %v474
        %v515 = vsub.f32 %v322, %v474
        %v516 = vsub.f32 %v323, %v475
        %v517 = vsub.f32 %v324, %v475
        %v518 = vsub.f32 %v325, %v476
        %v519 = vsub.f32 %v326, %v476
        %v520 = vsub.f32 %v327, %v477
        %v521 = vsub.f32 %v328, %v477
        %v522 = vsub.f32 %v329, %v478
        %v523 = vsub.f32 %v330, %v478
        %v524 = vsub.f32 %v331, %v479
        %v525 = vsub.f32 %v332, %v479
        %v526 = vsub.f32 %v333, %v480
        %v527 = vsub.f32 %v334, %v480
        %v528 = vsub.f32 %v335, %v481
        %v529 = vsub.f32 %v336, %v481
        %v530 = vsub.f32 %v337, %v482
        %v531 = vsub.f32 %v338, %v482
        %v532 = vsub.f32 %v339, %v483
        %v533 = vsub.f32 %v340, %v483
        %v534 = vsub.f32 %v341, %v484
        %v535 = vsub.f32 %v342, %v484
        %v536 = vsub.f32 %v343, %v485
        %v537 = vsub.f32 %v344, %v485
        %v538 = vsub.f32 %v345, %v486
        %v539 = vsub.f32 %v346, %v486
        %v540 = vsub.f32 %v347, %v487
        %v541 = vsub.f32 %v348, %v487
        %v542 = vsub.f32 %v349, %v488
        %v543 = vsub.f32 %v350, %v488
        %v544 = vsub.f32 %v351, %v489
        %v545 = vsub.f32 %v352, %v489
        %v546 = vsub.f32 %v353, %v490
        %v547 = vsub.f32 %v354, %v490
        %v548 = vsub.f32 %v355, %v491
        %v549 = vsub.f32 %v356, %v491
        %v550 = vsub.f32 %v357, %v492
        %v551 = vsub.f32 %v358, %v492
        %v552 = vsub.f32 %v359, %v493
        %v553 = vsub.f32 %v360, %v493
        %v554 = vsub.f32 %v361, %v494
        %v555 = vsub.f32 %v362, %v494
        %v556 = vsub.f32 %v363, %v495
        %v557 = vsub.f32 %v364, %v495
        %v558 = vsub.f32 %v365, %v496
        %v559 = vsub.f32 %v366, %v496
        %v560 = vsub.f32 %v367, %v497
        %v561 = vsub.f32 %v368, %v497
        %v562 = vmul.f32 %v498, %v498
        %v563 = vmul.f32 %v499, %v499
        %v564 = vmul.f32 %v500, %v500
        %v565 = vmul.f32 %v501, %v501
        %v566 = vmul.f32 %v502, %v502
        %v567 = vmul.f32 %v503, %v503
        %v568 = vmul.f32 %v504, %v504
        %v569 = vmul.f32 %v505, %v505
        %v570 = vmul.f32 %v506, %v506
        %v571 = vmul.f32 %v507, %v507
        %v572 = vmul.f32 %v508, %v508
        %v573 = vmul.f32 %v509, %v509
        %v574 = vmul.f32 %v510, %v510
        %v575 = vmul.f32 %v511, %v511
        %v576 = vmul.f32 %v512, %v512
        %v577 = vmul.f32 %v513, %v513
        %v578 = vmul.f32 %v514, %v514
        %v579 = vmul.f32 %v515, %v515
        %v580 = vmul.f32 %v516, %v516
        %v581 = vmul.f32 %v517, %v517
        %v582 = vmul.f32 %v518, %v518
        %v583 = vmul.f32 %v519, %v519
        %v584 = vmul.f32 %v520, %v520
        %v585 = vmul.f32 %v521, %v521
        %v586 = vmul.f32 %v522, %v522
        %v587 = vmul.f32 %v523, %v523
        %v588 = vmul.f32 %v524, %v524
        %v589 = vmul.f32 %v525, %v525
        %v590 = vmul.f32 %v526, %v526
        %v591 = vmul.f32 %v527, %v527
        %v592 = vmul.f32 %v528, %v528
        %v593 = vmul.f32 %v529, %v529
        %v594 = vmul.f32 %v530, %v530
        %v595 = vmul.f32 %v531, %v531
        %v596 = vmul.f32 %v532, %v532
        %v597 = vmul.f32 %v533, %v533
        %v598 = vmul.f32 %v534, %v534
        %v599 = vmul.f32 %v535, %v535
        %v600 = vmul.f32 %v536, %v536
        %v601 = vmul.f32 %v537, %v537
        %v602 = vmul.f32 %v538, %v538
        %v603 = vmul.f32 %v539, %v539
        %v604 = vmul.f32 %v540, %v540
        %v605 = vmul.f32 %v541, %v541
        %v606 = vmul.f32 %v542, %v542
        %v607 = vmul.f32 %v543, %v543
        %v608 = vmul.f32 %v544, %v544
        %v609 = vmul.f32 %v545, %v545
        %v610 = vmul.f32 %v546, %v546
        %v611 = vmul.f32 %v547, %v547
        %v612 = vmul.f32 %v548, %v548
        %v613 = vmul.f32 %v549, %v549
        %v614 = vmul.f32 %v550, %v550
        %v615 = vmul.f32 %v551, %v551
        %v616 = vmul.f32 %v552, %v552
        %v617 = vmul.f32 %v553, %v553
        %v618 = vmul.f32 %v554, %v554
        %v619 = vmul.f32 %v555, %v555
        %v620 = vmul.f32 %v556, %v556
        %v621 = vmul.f32 %v557, %v557
        %v622 = vmul.f32 %v558, %v558
        %v623 = vmul.f32 %v559, %v559
        %v624 = vmul.f32 %v560, %v560
        %v625 = vmul.f32 %v561, %v561
        %v626 = vadd.f32 %v562, %v563
        %627 = vadd.xlane.f32.xlu0 %v626
        %v628 = vpop.xlane.xlu0 %627
        %v629 = vadd.f32 %v564, %v565
        %630 = vadd.xlane.f32.xlu0 %v629
        %v631 = vpop.xlane.xlu0 %630
        %v632 = vadd.f32 %v566, %v567
        %633 = vadd.xlane.f32.xlu0 %v632
        %v634 = vpop.xlane.xlu0 %633
        %v635 = vadd.f32 %v568, %v569
        %636 = vadd.xlane.f32.xlu0 %v635
        %v637 = vpop.xlane.xlu0 %636
        %v638 = vadd.f32 %v570, %v571
        %639 = vadd.xlane.f32.xlu0 %v638
        %v640 = vpop.xlane.xlu0 %639
        %v641 = vadd.f32 %v572, %v573
        %642 = vadd.xlane.f32.xlu0 %v641
        %v643 = vpop.xlane.xlu0 %642
        %v644 = vadd.f32 %v574, %v575
        %645 = vadd.xlane.f32.xlu0 %v644
        %v646 = vpop.xlane.xlu0 %645
        %v647 = vadd.f32 %v576, %v577
        %648 = vadd.xlane.f32.xlu0 %v647
        %v649 = vpop.xlane.xlu0 %648
        %v650 = vadd.f32 %v578, %v579
        %651 = vadd.xlane.f32.xlu0 %v650
        %v652 = vpop.xlane.xlu0 %651
        %v653 = vadd.f32 %v580, %v581
        %654 = vadd.xlane.f32.xlu0 %v653
        %v655 = vpop.xlane.xlu0 %654
        %v656 = vadd.f32 %v582, %v583
        %657 = vadd.xlane.f32.xlu0 %v656
        %v658 = vpop.xlane.xlu0 %657
        %v659 = vadd.f32 %v584, %v585
        %660 = vadd.xlane.f32.xlu0 %v659
        %v661 = vpop.xlane.xlu0 %660
        %v662 = vadd.f32 %v586, %v587
        %663 = vadd.xlane.f32.xlu0 %v662
        %v664 = vpop.xlane.xlu0 %663
        %v665 = vadd.f32 %v588, %v589
        %666 = vadd.xlane.f32.xlu0 %v665
        %v667 = vpop.xlane.xlu0 %666
        %v668 = vadd.f32 %v590, %v591
        %669 = vadd.xlane.f32.xlu0 %v668
        %v670 = vpop.xlane.xlu0 %669
        %v671 = vadd.f32 %v592, %v593
        %672 = vadd.xlane.f32.xlu0 %v671
        %v673 = vpop.xlane.xlu0 %672
        %v674 = vadd.f32 %v594, %v595
        %675 = vadd.xlane.f32.xlu0 %v674
        %v676 = vpop.xlane.xlu0 %675
        %v677 = vadd.f32 %v596, %v597
        %678 = vadd.xlane.f32.xlu0 %v677
        %v679 = vpop.xlane.xlu0 %678
        %v680 = vadd.f32 %v598, %v599
        %681 = vadd.xlane.f32.xlu0 %v680
        %v682 = vpop.xlane.xlu0 %681
        %v683 = vadd.f32 %v600, %v601
        %684 = vadd.xlane.f32.xlu0 %v683
        %v685 = vpop.xlane.xlu0 %684
        %v686 = vadd.f32 %v602, %v603
        %687 = vadd.xlane.f32.xlu0 %v686
        %v688 = vpop.xlane.xlu0 %687
        %v689 = vadd.f32 %v604, %v605
        %690 = vadd.xlane.f32.xlu0 %v689
        %v691 = vpop.xlane.xlu0 %690
        %v692 = vadd.f32 %v606, %v607
        %693 = vadd.xlane.f32.xlu0 %v692
        %v694 = vpop.xlane.xlu0 %693
        %v695 = vadd.f32 %v608, %v609
        %696 = vadd.xlane.f32.xlu0 %v695
        %v697 = vpop.xlane.xlu0 %696
        %v698 = vadd.f32 %v610, %v611
        %699 = vadd.xlane.f32.xlu0 %v698
        %v700 = vpop.xlane.xlu0 %699
        %v701 = vadd.f32 %v612, %v613
        %702 = vadd.xlane.f32.xlu0 %v701
        %v703 = vpop.xlane.xlu0 %702
        %v704 = vadd.f32 %v614, %v615
        %705 = vadd.xlane.f32.xlu0 %v704
        %v706 = vpop.xlane.xlu0 %705
        %v707 = vadd.f32 %v616, %v617
        %708 = vadd.xlane.f32.xlu0 %v707
        %v709 = vpop.xlane.xlu0 %708
        %v710 = vadd.f32 %v618, %v619
        %711 = vadd.xlane.f32.xlu0 %v710
        %v712 = vpop.xlane.xlu0 %711
        %v713 = vadd.f32 %v620, %v621
        %714 = vadd.xlane.f32.xlu0 %v713
        %v715 = vpop.xlane.xlu0 %714
        %v716 = vadd.f32 %v622, %v623
        %717 = vadd.xlane.f32.xlu0 %v716
        %v718 = vpop.xlane.xlu0 %717
        %v719 = vadd.f32 %v624, %v625
        %720 = vadd.xlane.f32.xlu0 %v719
        %v721 = vpop.xlane.xlu0 %720
        %v722 = vmul.f32 %v628, %v465
        %v723 = vmul.f32 %v631, %v465
        %v724 = vmul.f32 %v634, %v465
        %v725 = vmul.f32 %v637, %v465
        %v726 = vmul.f32 %v640, %v465
        %v727 = vmul.f32 %v643, %v465
        %v728 = vmul.f32 %v646, %v465
        %v729 = vmul.f32 %v649, %v465
        %v730 = vmul.f32 %v652, %v465
        %v731 = vmul.f32 %v655, %v465
        %v732 = vmul.f32 %v658, %v465
        %v733 = vmul.f32 %v661, %v465
        %v734 = vmul.f32 %v664, %v465
        %v735 = vmul.f32 %v667, %v465
        %v736 = vmul.f32 %v670, %v465
        %v737 = vmul.f32 %v673, %v465
        %v738 = vmul.f32 %v676, %v465
        %v739 = vmul.f32 %v679, %v465
        %v740 = vmul.f32 %v682, %v465
        %v741 = vmul.f32 %v685, %v465
        %v742 = vmul.f32 %v688, %v465
        %v743 = vmul.f32 %v691, %v465
        %v744 = vmul.f32 %v694, %v465
        %v745 = vmul.f32 %v697, %v465
        %v746 = vmul.f32 %v700, %v465
        %v747 = vmul.f32 %v703, %v465
        %v748 = vmul.f32 %v706, %v465
        %v749 = vmul.f32 %v709, %v465
        %v750 = vmul.f32 %v712, %v465
        %v751 = vmul.f32 %v715, %v465
        %v752 = vmul.f32 %v718, %v465
        %v753 = vmul.f32 %v721, %v465
        %v754 = vadd.f32 %v722, 1e-05
        %v755 = vadd.f32 %v723, 1e-05
        %v756 = vadd.f32 %v724, 1e-05
        %v757 = vadd.f32 %v725, 1e-05
        %v758 = vadd.f32 %v726, 1e-05
        %v759 = vadd.f32 %v727, 1e-05
        %v760 = vadd.f32 %v728, 1e-05
        %v761 = vadd.f32 %v729, 1e-05
        %v762 = vadd.f32 %v730, 1e-05
        %v763 = vadd.f32 %v731, 1e-05
        %v764 = vadd.f32 %v732, 1e-05
        %v765 = vadd.f32 %v733, 1e-05
        %v766 = vadd.f32 %v734, 1e-05
        %v767 = vadd.f32 %v735, 1e-05
        %v768 = vadd.f32 %v736, 1e-05
        %v769 = vadd.f32 %v737, 1e-05
        %v770 = vadd.f32 %v738, 1e-05
        %v771 = vadd.f32 %v739, 1e-05
        %v772 = vadd.f32 %v740, 1e-05
        %v773 = vadd.f32 %v741, 1e-05
        %v774 = vadd.f32 %v742, 1e-05
        %v775 = vadd.f32 %v743, 1e-05
        %v776 = vadd.f32 %v744, 1e-05
        %v777 = vadd.f32 %v745, 1e-05
        %v778 = vadd.f32 %v746, 1e-05
        %v779 = vadd.f32 %v747, 1e-05
        %v780 = vadd.f32 %v748, 1e-05
        %v781 = vadd.f32 %v749, 1e-05
        %v782 = vadd.f32 %v750, 1e-05
        %v783 = vadd.f32 %v751, 1e-05
        %v784 = vadd.f32 %v752, 1e-05
        %v785 = vadd.f32 %v753, 1e-05
        %v786 = vrsqrt.pop %v754
        %v787 = vrsqrt.pop %v755
        %v788 = vrsqrt.pop %v756
        %v789 = vrsqrt.pop %v757
        %v790 = vrsqrt.pop %v758
        %v791 = vrsqrt.pop %v759
        %v792 = vrsqrt.pop %v760
        %v793 = vrsqrt.pop %v761
        %v794 = vrsqrt.pop %v762
        %v795 = vrsqrt.pop %v763
        %v796 = vrsqrt.pop %v764
        %v797 = vrsqrt.pop %v765
        %v798 = vrsqrt.pop %v766
        %v799 = vrsqrt.pop %v767
        %v800 = vrsqrt.pop %v768
        %v801 = vrsqrt.pop %v769
        %v802 = vrsqrt.pop %v770
        %v803 = vrsqrt.pop %v771
        %v804 = vrsqrt.pop %v772
        %v805 = vrsqrt.pop %v773
        %v806 = vrsqrt.pop %v774
        %v807 = vrsqrt.pop %v775
        %v808 = vrsqrt.pop %v776
        %v809 = vrsqrt.pop %v777
        %v810 = vrsqrt.pop %v778
        %v811 = vrsqrt.pop %v779
        %v812 = vrsqrt.pop %v780
        %v813 = vrsqrt.pop %v781
        %v814 = vrsqrt.pop %v782
        %v815 = vrsqrt.pop %v783
        %v816 = vrsqrt.pop %v784
        %v817 = vrsqrt.pop %v785
        %v818 = vmul.f32 %v498, %v786
        %v819 = vmul.f32 %v499, %v786
        %v820 = vmul.f32 %v500, %v787
        %v821 = vmul.f32 %v501, %v787
        %v822 = vmul.f32 %v502, %v788
        %v823 = vmul.f32 %v503, %v788
        %v824 = vmul.f32 %v504, %v789
        %v825 = vmul.f32 %v505, %v789
        %v826 = vmul.f32 %v506, %v790
        %v827 = vmul.f32 %v507, %v790
        %v828 = vmul.f32 %v508, %v791
        %v829 = vmul.f32 %v509, %v791
        %v830 = vmul.f32 %v510, %v792
        %v831 = vmul.f32 %v511, %v792
        %v832 = vmul.f32 %v512, %v793
        %v833 = vmul.f32 %v513, %v793
        %v834 = vmul.f32 %v514, %v794
        %v835 = vmul.f32 %v515, %v794
        %v836 = vmul.f32 %v516, %v795
        %v837 = vmul.f32 %v517, %v795
        %v838 = vmul.f32 %v518, %v796
        %v839 = vmul.f32 %v519, %v796
        %v840 = vmul.f32 %v520, %v797
        %v841 = vmul.f32 %v521, %v797
        %v842 = vmul.f32 %v522, %v798
        %v843 = vmul.f32 %v523, %v798
        %v844 = vmul.f32 %v524, %v799
        %v845 = vmul.f32 %v525, %v799
        %v846 = vmul.f32 %v526, %v800
        %v847 = vmul.f32 %v527, %v800
        %v848 = vmul.f32 %v528, %v801
        %v849 = vmul.f32 %v529, %v801
        %v850 = vmul.f32 %v530, %v802
        %v851 = vmul.f32 %v531, %v802
        %v852 = vmul.f32 %v532, %v803
        %v853 = vmul.f32 %v533, %v803
        %v854 = vmul.f32 %v534, %v804
        %v855 = vmul.f32 %v535, %v804
        %v856 = vmul.f32 %v536, %v805
        %v857 = vmul.f32 %v537, %v805
        %v858 = vmul.f32 %v538, %v806
        %v859 = vmul.f32 %v539, %v806
        %v860 = vmul.f32 %v540, %v807
        %v861 = vmul.f32 %v541, %v807
        %v862 = vmul.f32 %v542, %v808
        %v863 = vmul.f32 %v543, %v808
        %v864 = vmul.f32 %v544, %v809
        %v865 = vmul.f32 %v545, %v809
        %v866 = vmul.f32 %v546, %v810
        %v867 = vmul.f32 %v547, %v810
        %v868 = vmul.f32 %v548, %v811
        %v869 = vmul.f32 %v549, %v811
        %v870 = vmul.f32 %v550, %v812
        %v871 = vmul.f32 %v551, %v812
        %v872 = vmul.f32 %v552, %v813
        %v873 = vmul.f32 %v553, %v813
        %v874 = vmul.f32 %v554, %v814
        %v875 = vmul.f32 %v555, %v814
        %v876 = vmul.f32 %v556, %v815
        %v877 = vmul.f32 %v557, %v815
        %v878 = vmul.f32 %v558, %v816
        %v879 = vmul.f32 %v559, %v816
        %v880 = vmul.f32 %v560, %v817
        %v881 = vmul.f32 %v561, %v817
        %v882 = vld [vmem:[%s1] sm:$0x3]
        %v884 = vlaneseq
        %v885 = vshrl.u32 %v884, 7
        %v886 = vsub.s32 0, %v885
        %v887 = vrot.slane %v882, %v886
        %v888 = vlaneseq
        %v889 = vshrl.u32 %v888, 7
        %v890 = vsub.s32 1, %v889
        %v891 = vrot.slane %v882, %v890
        %v894 = vmul.f32 %v818, %v887
        %v895 = vmul.f32 %v819, %v891
        %v896 = vmul.f32 %v820, %v887
        %v897 = vmul.f32 %v821, %v891
        %v898 = vmul.f32 %v822, %v887
        %v899 = vmul.f32 %v823, %v891
        %v900 = vmul.f32 %v824, %v887
        %v901 = vmul.f32 %v825, %v891
        %v902 = vmul.f32 %v826, %v887
        %v903 = vmul.f32 %v827, %v891
        %v904 = vmul.f32 %v828, %v887
        %v905 = vmul.f32 %v829, %v891
        %v906 = vmul.f32 %v830, %v887
        %v907 = vmul.f32 %v831, %v891
        %v908 = vmul.f32 %v832, %v887
        %v909 = vmul.f32 %v833, %v891
        %v910 = vmul.f32 %v834, %v887
        %v911 = vmul.f32 %v835, %v891
        %v912 = vmul.f32 %v836, %v887
        %v913 = vmul.f32 %v837, %v891
        %v914 = vmul.f32 %v838, %v887
        %v915 = vmul.f32 %v839, %v891
        %v916 = vmul.f32 %v840, %v887
        %v917 = vmul.f32 %v841, %v891
        %v918 = vmul.f32 %v842, %v887
        %v919 = vmul.f32 %v843, %v891
        %v920 = vmul.f32 %v844, %v887
        %v921 = vmul.f32 %v845, %v891
        %v922 = vmul.f32 %v846, %v887
        %v923 = vmul.f32 %v847, %v891
        %v924 = vmul.f32 %v848, %v887
        %v925 = vmul.f32 %v849, %v891
        %v926 = vmul.f32 %v850, %v887
        %v927 = vmul.f32 %v851, %v891
        %v928 = vmul.f32 %v852, %v887
        %v929 = vmul.f32 %v853, %v891
        %v930 = vmul.f32 %v854, %v887
        %v931 = vmul.f32 %v855, %v891
        %v932 = vmul.f32 %v856, %v887
        %v933 = vmul.f32 %v857, %v891
        %v934 = vmul.f32 %v858, %v887
        %v935 = vmul.f32 %v859, %v891
        %v936 = vmul.f32 %v860, %v887
        %v937 = vmul.f32 %v861, %v891
        %v938 = vmul.f32 %v862, %v887
        %v939 = vmul.f32 %v863, %v891
        %v940 = vmul.f32 %v864, %v887
        %v941 = vmul.f32 %v865, %v891
        %v942 = vmul.f32 %v866, %v887
        %v943 = vmul.f32 %v867, %v891
        %v944 = vmul.f32 %v868, %v887
        %v945 = vmul.f32 %v869, %v891
        %v946 = vmul.f32 %v870, %v887
        %v947 = vmul.f32 %v871, %v891
        %v948 = vmul.f32 %v872, %v887
        %v949 = vmul.f32 %v873, %v891
        %v950 = vmul.f32 %v874, %v887
        %v951 = vmul.f32 %v875, %v891
        %v952 = vmul.f32 %v876, %v887
        %v953 = vmul.f32 %v877, %v891
        %v954 = vmul.f32 %v878, %v887
        %v955 = vmul.f32 %v879, %v891
        %v956 = vmul.f32 %v880, %v887
        %v957 = vmul.f32 %v881, %v891
        %v958 = vld [vmem:[%s2] sm:$0x3]
        %v960 = vlaneseq
        %v961 = vshrl.u32 %v960, 7
        %v962 = vsub.s32 0, %v961
        %v963 = vrot.slane %v958, %v962
        %v964 = vlaneseq
        %v965 = vshrl.u32 %v964, 7
        %v966 = vsub.s32 1, %v965
        %v967 = vrot.slane %v958, %v966
        %v970 = vadd.f32 %v894, %v963
        %v971 = vadd.f32 %v895, %v967
        %v972 = vadd.f32 %v896, %v963
        %v973 = vadd.f32 %v897, %v967
        %v974 = vadd.f32 %v898, %v963
        %v975 = vadd.f32 %v899, %v967
        %v976 = vadd.f32 %v900, %v963
        %v977 = vadd.f32 %v901, %v967
        %v978 = vadd.f32 %v902, %v963
        %v979 = vadd.f32 %v903, %v967
        %v980 = vadd.f32 %v904, %v963
        %v981 = vadd.f32 %v905, %v967
        %v982 = vadd.f32 %v906, %v963
        %v983 = vadd.f32 %v907, %v967
        %v984 = vadd.f32 %v908, %v963
        %v985 = vadd.f32 %v909, %v967
        %v986 = vadd.f32 %v910, %v963
        %v987 = vadd.f32 %v911, %v967
        %v988 = vadd.f32 %v912, %v963
        %v989 = vadd.f32 %v913, %v967
        %v990 = vadd.f32 %v914, %v963
        %v991 = vadd.f32 %v915, %v967
        %v992 = vadd.f32 %v916, %v963
        %v993 = vadd.f32 %v917, %v967
        %v994 = vadd.f32 %v918, %v963
        %v995 = vadd.f32 %v919, %v967
        %v996 = vadd.f32 %v920, %v963
        %v997 = vadd.f32 %v921, %v967
        %v998 = vadd.f32 %v922, %v963
        %v999 = vadd.f32 %v923, %v967
        %v1000 = vadd.f32 %v924, %v963
        %v1001 = vadd.f32 %v925, %v967
        %v1002 = vadd.f32 %v926, %v963
        %v1003 = vadd.f32 %v927, %v967
        %v1004 = vadd.f32 %v928, %v963
        %v1005 = vadd.f32 %v929, %v967
        %v1006 = vadd.f32 %v930, %v963
        %v1007 = vadd.f32 %v931, %v967
        %v1008 = vadd.f32 %v932, %v963
        %v1009 = vadd.f32 %v933, %v967
        %v1010 = vadd.f32 %v934, %v963
        %v1011 = vadd.f32 %v935, %v967
        %v1012 = vadd.f32 %v936, %v963
        %v1013 = vadd.f32 %v937, %v967
        %v1014 = vadd.f32 %v938, %v963
        %v1015 = vadd.f32 %v939, %v967
        %v1016 = vadd.f32 %v940, %v963
        %v1017 = vadd.f32 %v941, %v967
        %v1018 = vadd.f32 %v942, %v963
        %v1019 = vadd.f32 %v943, %v967
        %v1020 = vadd.f32 %v944, %v963
        %v1021 = vadd.f32 %v945, %v967
        %v1022 = vadd.f32 %v946, %v963
        %v1023 = vadd.f32 %v947, %v967
        %v1024 = vadd.f32 %v948, %v963
        %v1025 = vadd.f32 %v949, %v967
        %v1026 = vadd.f32 %v950, %v963
        %v1027 = vadd.f32 %v951, %v967
        %v1028 = vadd.f32 %v952, %v963
        %v1029 = vadd.f32 %v953, %v967
        %v1030 = vadd.f32 %v954, %v963
        %v1031 = vadd.f32 %v955, %v967
        %v1032 = vadd.f32 %v956, %v963
        %v1033 = vadd.f32 %v957, %v967
        %v1034 = vpack.c.bf16 %v972, %v970
        %v1035 = vpack.c.bf16 %v973, %v971
        %v1036 = vpack.c.bf16 %v976, %v974
        %v1037 = vpack.c.bf16 %v977, %v975
        %v1038 = vpack.c.bf16 %v980, %v978
        %v1039 = vpack.c.bf16 %v981, %v979
        %v1040 = vpack.c.bf16 %v984, %v982
        %v1041 = vpack.c.bf16 %v985, %v983
        %v1042 = vpack.c.bf16 %v988, %v986
        %v1043 = vpack.c.bf16 %v989, %v987
        %v1044 = vpack.c.bf16 %v992, %v990
        %v1045 = vpack.c.bf16 %v993, %v991
        %v1046 = vpack.c.bf16 %v996, %v994
        %v1047 = vpack.c.bf16 %v997, %v995
        %v1048 = vpack.c.bf16 %v1000, %v998
        %v1049 = vpack.c.bf16 %v1001, %v999
        %v1050 = vpack.c.bf16 %v1004, %v1002
        %v1051 = vpack.c.bf16 %v1005, %v1003
        %v1052 = vpack.c.bf16 %v1008, %v1006
        %v1053 = vpack.c.bf16 %v1009, %v1007
        %v1054 = vpack.c.bf16 %v1012, %v1010
        %v1055 = vpack.c.bf16 %v1013, %v1011
        %v1056 = vpack.c.bf16 %v1016, %v1014
        %v1057 = vpack.c.bf16 %v1017, %v1015
        %v1058 = vpack.c.bf16 %v1020, %v1018
        %v1059 = vpack.c.bf16 %v1021, %v1019
        %v1060 = vpack.c.bf16 %v1024, %v1022
        %v1061 = vpack.c.bf16 %v1025, %v1023
        %v1062 = vpack.c.bf16 %v1028, %v1026
        %v1063 = vpack.c.bf16 %v1029, %v1027
        %v1064 = vpack.c.bf16 %v1032, %v1030
        %v1065 = vpack.c.bf16 %v1033, %v1031
        %v1066 = vld [vmem:[%s264] sm:$0xff]
        %v1067 = vld [vmem:[%s264 + $0x8] sm:$0xf]
        %v1068 = vld [vmem:[%s264 + $0xc] sm:$0xff]
        %v1069 = vld [vmem:[%s264 + $0x14] sm:$0xf]
        %v1070 = vld [vmem:[%s264 + $0x18] sm:$0xff]
        %v1071 = vld [vmem:[%s264 + $0x20] sm:$0xf]
        %v1072 = vld [vmem:[%s264 + $0x24] sm:$0xff]
        %v1073 = vld [vmem:[%s264 + $0x2c] sm:$0xf]
        %v1074 = vld [vmem:[%s264 + $0x30] sm:$0xff]
        %v1075 = vld [vmem:[%s264 + $0x38] sm:$0xf]
        %v1076 = vld [vmem:[%s264 + $0x3c] sm:$0xff]
        %v1077 = vld [vmem:[%s264 + $0x44] sm:$0xf]
        %v1078 = vld [vmem:[%s264 + $0x48] sm:$0xff]
        %v1079 = vld [vmem:[%s264 + $0x50] sm:$0xf]
        %v1080 = vld [vmem:[%s264 + $0x54] sm:$0xff]
        %v1081 = vld [vmem:[%s264 + $0x5c] sm:$0xf]
        %v1082 = vld [vmem:[%s264 + $0x60] sm:$0xff]
        %v1083 = vld [vmem:[%s264 + $0x68] sm:$0xf]
        %v1084 = vld [vmem:[%s264 + $0x6c] sm:$0xff]
        %v1085 = vld [vmem:[%s264 + $0x74] sm:$0xf]
        %v1086 = vld [vmem:[%s264 + $0x78] sm:$0xff]
        %v1087 = vld [vmem:[%s264 + $0x80] sm:$0xf]
        %v1088 = vld [vmem:[%s264 + $0x84] sm:$0xff]
        %v1089 = vld [vmem:[%s264 + $0x8c] sm:$0xf]
        %v1090 = vld [vmem:[%s264 + $0x90] sm:$0xff]
        %v1091 = vld [vmem:[%s264 + $0x98] sm:$0xf]
        %v1092 = vld [vmem:[%s264 + $0x9c] sm:$0xff]
        %v1093 = vld [vmem:[%s264 + $0xa4] sm:$0xf]
        %v1094 = vld [vmem:[%s264 + $0xa8] sm:$0xff]
        %v1095 = vld [vmem:[%s264 + $0xb0] sm:$0xf]
        %v1096 = vld [vmem:[%s264 + $0xb4] sm:$0xff]
        %v1097 = vld [vmem:[%s264 + $0xbc] sm:$0xf]
        %v1098 = vld [vmem:[%s264 + $0xc0] sm:$0xff]
        %v1099 = vld [vmem:[%s264 + $0xc8] sm:$0xf]
        %v1100 = vld [vmem:[%s264 + $0xcc] sm:$0xff]
        %v1101 = vld [vmem:[%s264 + $0xd4] sm:$0xf]
        %v1102 = vld [vmem:[%s264 + $0xd8] sm:$0xff]
        %v1103 = vld [vmem:[%s264 + $0xe0] sm:$0xf]
        %v1104 = vld [vmem:[%s264 + $0xe4] sm:$0xff]
        %v1105 = vld [vmem:[%s264 + $0xec] sm:$0xf]
        %v1106 = vld [vmem:[%s264 + $0xf0] sm:$0xff]
        %v1107 = vld [vmem:[%s264 + $0xf8] sm:$0xf]
        %v1108 = vld [vmem:[%s264 + $0xfc] sm:$0xff]
        %v1109 = vld [vmem:[%s264 + $0x104] sm:$0xf]
        %v1110 = vld [vmem:[%s264 + $0x108] sm:$0xff]
        %v1111 = vld [vmem:[%s264 + $0x110] sm:$0xf]
        %v1112 = vld [vmem:[%s264 + $0x114] sm:$0xff]
        %v1113 = vld [vmem:[%s264 + $0x11c] sm:$0xf]
        %v1114 = vld [vmem:[%s264 + $0x120] sm:$0xff]
        %v1115 = vld [vmem:[%s264 + $0x128] sm:$0xf]
        %v1116 = vld [vmem:[%s264 + $0x12c] sm:$0xff]
        %v1117 = vld [vmem:[%s264 + $0x134] sm:$0xf]
        %v1118 = vld [vmem:[%s264 + $0x138] sm:$0xff]
        %v1119 = vld [vmem:[%s264 + $0x140] sm:$0xf]
        %v1120 = vld [vmem:[%s264 + $0x144] sm:$0xff]
        %v1121 = vld [vmem:[%s264 + $0x14c] sm:$0xf]
        %v1122 = vld [vmem:[%s264 + $0x150] sm:$0xff]
        %v1123 = vld [vmem:[%s264 + $0x158] sm:$0xf]
        %v1124 = vld [vmem:[%s264 + $0x15c] sm:$0xff]
        %v1125 = vld [vmem:[%s264 + $0x164] sm:$0xf]
        %v1126 = vld [vmem:[%s264 + $0x168] sm:$0xff]
        %v1127 = vld [vmem:[%s264 + $0x170] sm:$0xf]
        %v1128 = vld [vmem:[%s264 + $0x174] sm:$0xff]
        %v1129 = vld [vmem:[%s264 + $0x17c] sm:$0xf]
        %v1130 = vld [vmem:[%s300] sm:$0x7]
        %v1132 = vlaneseq
        %v1133 = vshrl.u32 %v1132, 7
        %v1134 = vsub.s32 0, %v1133
        %v1135 = vrot.slane %v1130, %v1134
        %v1136 = vlaneseq
        %v1137 = vshrl.u32 %v1136, 7
        %v1138 = vsub.s32 1, %v1137
        %v1139 = vrot.slane %v1130, %v1138
        %v1140 = vlaneseq
        %v1141 = vshrl.u32 %v1140, 7
        %v1142 = vsub.s32 2, %v1141
        %v1143 = vrot.slane %v1130, %v1142
        %v1211 = vunpack.c.l.b16 %v1066
        %v1212 = vunpack.c.h.b16 %v1066
        %v1213 = vunpack.c.l.b16 %v1067
        %v1214 = vunpack.c.l.b16 %v1068
        %v1215 = vunpack.c.h.b16 %v1068
        %v1216 = vunpack.c.l.b16 %v1069
        %v1217 = vunpack.c.l.b16 %v1070
        %v1218 = vunpack.c.h.b16 %v1070
        %v1219 = vunpack.c.l.b16 %v1071
        %v1220 = vunpack.c.l.b16 %v1072
        %v1221 = vunpack.c.h.b16 %v1072
        %v1222 = vunpack.c.l.b16 %v1073
        %v1223 = vunpack.c.l.b16 %v1074
        %v1224 = vunpack.c.h.b16 %v1074
        %v1225 = vunpack.c.l.b16 %v1075
        %v1226 = vunpack.c.l.b16 %v1076
        %v1227 = vunpack.c.h.b16 %v1076
        %v1228 = vunpack.c.l.b16 %v1077
        %v1229 = vunpack.c.l.b16 %v1078
        %v1230 = vunpack.c.h.b16 %v1078
        %v1231 = vunpack.c.l.b16 %v1079
        %v1232 = vunpack.c.l.b16 %v1080
        %v1233 = vunpack.c.h.b16 %v1080
        %v1234 = vunpack.c.l.b16 %v1081
        %v1235 = vunpack.c.l.b16 %v1082
        %v1236 = vunpack.c.h.b16 %v1082
        %v1237 = vunpack.c.l.b16 %v1083
        %v1238 = vunpack.c.l.b16 %v1084
        %v1239 = vunpack.c.h.b16 %v1084
        %v1240 = vunpack.c.l.b16 %v1085
        %v1241 = vunpack.c.l.b16 %v1086
        %v1242 = vunpack.c.h.b16 %v1086
        %v1243 = vunpack.c.l.b16 %v1087
        %v1244 = vunpack.c.l.b16 %v1088
        %v1245 = vunpack.c.h.b16 %v1088
        %v1246 = vunpack.c.l.b16 %v1089
        %v1247 = vunpack.c.l.b16 %v1090
        %v1248 = vunpack.c.h.b16 %v1090
        %v1249 = vunpack.c.l.b16 %v1091
        %v1250 = vunpack.c.l.b16 %v1092
        %v1251 = vunpack.c.h.b16 %v1092
        %v1252 = vunpack.c.l.b16 %v1093
        %v1253 = vunpack.c.l.b16 %v1094
        %v1254 = vunpack.c.h.b16 %v1094
        %v1255 = vunpack.c.l.b16 %v1095
        %v1256 = vunpack.c.l.b16 %v1096
        %v1257 = vunpack.c.h.b16 %v1096
        %v1258 = vunpack.c.l.b16 %v1097
        %v1259 = vunpack.c.l.b16 %v1098
        %v1260 = vunpack.c.h.b16 %v1098
        %v1261 = vunpack.c.l.b16 %v1099
        %v1262 = vunpack.c.l.b16 %v1100
        %v1263 = vunpack.c.h.b16 %v1100
        %v1264 = vunpack.c.l.b16 %v1101
        %v1265 = vunpack.c.l.b16 %v1102
        %v1266 = vunpack.c.h.b16 %v1102
        %v1267 = vunpack.c.l.b16 %v1103
        %v1268 = vunpack.c.l.b16 %v1104
        %v1269 = vunpack.c.h.b16 %v1104
        %v1270 = vunpack.c.l.b16 %v1105
        %v1271 = vunpack.c.l.b16 %v1106
        %v1272 = vunpack.c.h.b16 %v1106
        %v1273 = vunpack.c.l.b16 %v1107
        %v1274 = vunpack.c.l.b16 %v1108
        %v1275 = vunpack.c.h.b16 %v1108
        %v1276 = vunpack.c.l.b16 %v1109
        %v1277 = vunpack.c.l.b16 %v1110
        %v1278 = vunpack.c.h.b16 %v1110
        %v1279 = vunpack.c.l.b16 %v1111
        %v1280 = vunpack.c.l.b16 %v1112
        %v1281 = vunpack.c.h.b16 %v1112
        %v1282 = vunpack.c.l.b16 %v1113
        %v1283 = vunpack.c.l.b16 %v1114
        %v1284 = vunpack.c.h.b16 %v1114
        %v1285 = vunpack.c.l.b16 %v1115
        %v1286 = vunpack.c.l.b16 %v1116
        %v1287 = vunpack.c.h.b16 %v1116
        %v1288 = vunpack.c.l.b16 %v1117
        %v1289 = vunpack.c.l.b16 %v1118
        %v1290 = vunpack.c.h.b16 %v1118
        %v1291 = vunpack.c.l.b16 %v1119
        %v1292 = vunpack.c.l.b16 %v1120
        %v1293 = vunpack.c.h.b16 %v1120
        %v1294 = vunpack.c.l.b16 %v1121
        %v1295 = vunpack.c.l.b16 %v1122
        %v1296 = vunpack.c.h.b16 %v1122
        %v1297 = vunpack.c.l.b16 %v1123
        %v1298 = vunpack.c.l.b16 %v1124
        %v1299 = vunpack.c.h.b16 %v1124
        %v1300 = vunpack.c.l.b16 %v1125
        %v1301 = vunpack.c.l.b16 %v1126
        %v1302 = vunpack.c.h.b16 %v1126
        %v1303 = vunpack.c.l.b16 %v1127
        %v1304 = vunpack.c.l.b16 %v1128
        %v1305 = vunpack.c.h.b16 %v1128
        %v1306 = vunpack.c.l.b16 %v1129
        %v1307 = vpack.c.b16 %v1214, %v1211
        %v1308 = vpack.c.b16 %v1215, %v1212
        %v1309 = vpack.c.b16 %v1216, %v1213
        %v1310 = vpack.c.b16 %v1220, %v1217
        %v1311 = vpack.c.b16 %v1221, %v1218
        %v1312 = vpack.c.b16 %v1222, %v1219
        %v1313 = vpack.c.b16 %v1226, %v1223
        %v1314 = vpack.c.b16 %v1227, %v1224
        %v1315 = vpack.c.b16 %v1228, %v1225
        %v1316 = vpack.c.b16 %v1232, %v1229
        %v1317 = vpack.c.b16 %v1233, %v1230
        %v1318 = vpack.c.b16 %v1234, %v1231
        %v1319 = vpack.c.b16 %v1238, %v1235
        %v1320 = vpack.c.b16 %v1239, %v1236
        %v1321 = vpack.c.b16 %v1240, %v1237
        %v1322 = vpack.c.b16 %v1244, %v1241
        %v1323 = vpack.c.b16 %v1245, %v1242
        %v1324 = vpack.c.b16 %v1246, %v1243
        %v1325 = vpack.c.b16 %v1250, %v1247
        %v1326 = vpack.c.b16 %v1251, %v1248
        %v1327 = vpack.c.b16 %v1252, %v1249
        %v1328 = vpack.c.b16 %v1256, %v1253
        %v1329 = vpack.c.b16 %v1257, %v1254
        %v1330 = vpack.c.b16 %v1258, %v1255
        %v1331 = vpack.c.b16 %v1262, %v1259
        %v1332 = vpack.c.b16 %v1263, %v1260
        %v1333 = vpack.c.b16 %v1264, %v1261
        %v1334 = vpack.c.b16 %v1268, %v1265
        %v1335 = vpack.c.b16 %v1269, %v1266
        %v1336 = vpack.c.b16 %v1270, %v1267
        %v1337 = vpack.c.b16 %v1274, %v1271
        %v1338 = vpack.c.b16 %v1275, %v1272
        %v1339 = vpack.c.b16 %v1276, %v1273
        %v1340 = vpack.c.b16 %v1280, %v1277
        %v1341 = vpack.c.b16 %v1281, %v1278
        %v1342 = vpack.c.b16 %v1282, %v1279
        %v1343 = vpack.c.b16 %v1286, %v1283
        %v1344 = vpack.c.b16 %v1287, %v1284
        %v1345 = vpack.c.b16 %v1288, %v1285
        %v1346 = vpack.c.b16 %v1292, %v1289
        %v1347 = vpack.c.b16 %v1293, %v1290
        %v1348 = vpack.c.b16 %v1294, %v1291
        %v1349 = vpack.c.b16 %v1298, %v1295
        %v1350 = vpack.c.b16 %v1299, %v1296
        %v1351 = vpack.c.b16 %v1300, %v1297
        %v1352 = vpack.c.b16 %v1304, %v1301
        %v1353 = vpack.c.b16 %v1305, %v1302
        %v1354 = vpack.c.b16 %v1306, %v1303
        %1403 = vmatprep.subr.bf16.mxu0 %v1308
        %1404 = vmatpush1.bf16.msra.mxu0 %v1307
        %1405 = vmatprep.subr.bf16.mxu0 %v1311
        %1406 = vmatpush1.bf16.msra.mxu0 %v1310
        %1407 = vmatprep.subr.bf16.mxu0 %v1314
        %1408 = vmatpush1.bf16.msra.mxu0 %v1313
        %1409 = vmatprep.subr.bf16.mxu0 %v1317
        %1410 = vmatpush1.bf16.msra.mxu0 %v1316
        %1411 = vmatprep.subr.bf16.mxu0 %v1320
        %1412 = vmatpush1.bf16.msra.mxu0 %v1319
        %1413 = vmatprep.subr.bf16.mxu0 %v1323
        %1414 = vmatpush1.bf16.msra.mxu0 %v1322
        %1415 = vmatprep.subr.bf16.mxu0 %v1326
        %1416 = vmatpush1.bf16.msra.mxu0 %v1325
        %1417 = vmatprep.subr.bf16.mxu0 %v1329
        %1418 = vmatpush1.bf16.msra.mxu0 %v1328
        %1419 = vmatprep.subr.bf16.mxu0 %v1332
        %1420 = vmatpush1.bf16.msra.mxu0 %v1331
        %1421 = vmatprep.subr.bf16.mxu0 %v1335
        %1422 = vmatpush1.bf16.msra.mxu0 %v1334
        %1423 = vmatprep.subr.bf16.mxu0 %v1338
        %1424 = vmatpush1.bf16.msra.mxu0 %v1337
        %1425 = vmatprep.subr.bf16.mxu0 %v1341
        %1426 = vmatpush1.bf16.msra.mxu0 %v1340
        %1427 = vmatprep.subr.bf16.mxu0 %v1344
        %1428 = vmatpush1.bf16.msra.mxu0 %v1343
        %1429 = vmatprep.subr.bf16.mxu0 %v1347
        %1430 = vmatpush1.bf16.msra.mxu0 %v1346
        %1431 = vmatprep.subr.bf16.mxu0 %v1350
        %1432 = vmatpush1.bf16.msra.mxu0 %v1349
        %1433 = vmatprep.subr.bf16.mxu0 %v1353
        %1434 = vmatpush1.bf16.msra.mxu0 %v1352
        %1435 = vmatprep.mubr.bf16.mxu0 %v1035
        %1436 = vmatmul.mubr.bf16.gmra.mrb[0].mxu0 %v1034
        %v1437 = vpop.f32.mrb[0].mxu0
        %v1438 = vadd.f32 %v1135, %v1437
        %v1439 = vpop.f32.mrb[0].mxu0
        %v1440 = vadd.f32 %v1139, %v1439
        %v1441 = vpop.f32.mrb[0].mxu0
        %v1442 = vadd.f32 %v1135, %v1441
        %v1443 = vpop.f32.mrb[0].mxu0
        %v1444 = vadd.f32 %v1139, %v1443
        %1445 = vmatprep.mubr.bf16.mxu0 %v1037
        %1446 = vmatmul.mubr.bf16.gmra.mrb[0].mxu0 %v1036
        %v1447 = vpop.f32.mrb[0].mxu0
        %v1448 = vadd.f32 %v1135, %v1447
        %v1449 = vpop.f32.mrb[0].mxu0
        %v1450 = vadd.f32 %v1139, %v1449
        %v1451 = vpop.f32.mrb[0].mxu0
        %v1452 = vadd.f32 %v1135, %v1451
        %v1453 = vpop.f32.mrb[0].mxu0
        %v1454 = vadd.f32 %v1139, %v1453
        %1455 = vmatprep.mubr.bf16.mxu0 %v1039
        %1456 = vmatmul.mubr.bf16.gmra.mrb[0].mxu0 %v1038
        %v1457 = vpop.f32.mrb[0].mxu0
        %v1458 = vadd.f32 %v1135, %v1457
        %v1459 = vpop.f32.mrb[0].mxu0
        %v1460 = vadd.f32 %v1139, %v1459
        %v1461 = vpop.f32.mrb[0].mxu0
        %v1462 = vadd.f32 %v1135, %v1461
        %v1463 = vpop.f32.mrb[0].mxu0
        %v1464 = vadd.f32 %v1139, %v1463
        %1465 = vmatprep.mubr.bf16.mxu0 %v1041
        %1466 = vmatmul.mubr.bf16.gmra.mrb[0].mxu0 %v1040
        %v1467 = vpop.f32.mrb[0].mxu0
        %v1468 = vadd.f32 %v1135, %v1467
        %v1469 = vpop.f32.mrb[0].mxu0
        %v1470 = vadd.f32 %v1139, %v1469
        %v1471 = vpop.f32.mrb[0].mxu0
        %v1472 = vadd.f32 %v1135, %v1471
        %v1473 = vpop.f32.mrb[0].mxu0
        %v1474 = vadd.f32 %v1139, %v1473
        %1475 = vmatprep.mubr.bf16.mxu0 %v1043
        %1476 = vmatmul.mubr.bf16.gmra.mrb[0].mxu0 %v1042
        %v1477 = vpop.f32.mrb[0].mxu0
        %v1478 = vadd.f32 %v1135, %v1477
        %v1479 = vpop.f32.mrb[0].mxu0
        %v1480 = vadd.f32 %v1139, %v1479
        %v1481 = vpop.f32.mrb[0].mxu0
        %v1482 = vadd.f32 %v1135, %v1481
        %v1483 = vpop.f32.mrb[0].mxu0
        %v1484 = vadd.f32 %v1139, %v1483
        %1485 = vmatprep.mubr.bf16.mxu0 %v1045
        %1486 = vmatmul.mubr.bf16.gmra.mrb[0].mxu0 %v1044
        %v1487 = vpop.f32.mrb[0].mxu0
        %v1488 = vadd.f32 %v1135, %v1487
        %v1489 = vpop.f32.mrb[0].mxu0
        %v1490 = vadd.f32 %v1139, %v1489
        %v1491 = vpop.f32.mrb[0].mxu0
        %v1492 = vadd.f32 %v1135, %v1491
        %v1493 = vpop.f32.mrb[0].mxu0
        %v1494 = vadd.f32 %v1139, %v1493
        %1495 = vmatprep.mubr.bf16.mxu0 %v1047
        %1496 = vmatmul.mubr.bf16.gmra.mrb[0].mxu0 %v1046
        %v1497 = vpop.f32.mrb[0].mxu0
        %v1498 = vadd.f32 %v1135, %v1497
        %v1499 = vpop.f32.mrb[0].mxu0
        %v1500 = vadd.f32 %v1139, %v1499
        %v1501 = vpop.f32.mrb[0].mxu0
        %v1502 = vadd.f32 %v1135, %v1501
        %v1503 = vpop.f32.mrb[0].mxu0
        %v1504 = vadd.f32 %v1139, %v1503
        %1505 = vmatprep.mubr.bf16.mxu0 %v1049
        %1506 = vmatmul.mubr.bf16.gmra.mrb[0].mxu0 %v1048
        %v1507 = vpop.f32.mrb[0].mxu0
        %v1508 = vadd.f32 %v1135, %v1507
        %v1509 = vpop.f32.mrb[0].mxu0
        %v1510 = vadd.f32 %v1139, %v1509
        %v1511 = vpop.f32.mrb[0].mxu0
        %v1512 = vadd.f32 %v1135, %v1511
        %v1513 = vpop.f32.mrb[0].mxu0
        %v1514 = vadd.f32 %v1139, %v1513
        %1515 = vmatprep.mubr.bf16.mxu0 %v1051
        %1516 = vmatmul.mubr.bf16.gmra.mrb[0].mxu0 %v1050
        %v1517 = vpop.f32.mrb[0].mxu0
        %v1518 = vadd.f32 %v1135, %v1517
        %v1519 = vpop.f32.mrb[0].mxu0
        %v1520 = vadd.f32 %v1139, %v1519
        %v1521 = vpop.f32.mrb[0].mxu0
        %v1522 = vadd.f32 %v1135, %v1521
        %v1523 = vpop.f32.mrb[0].mxu0
        %v1524 = vadd.f32 %v1139, %v1523
        %1525 = vmatprep.mubr.bf16.mxu0 %v1053
        %1526 = vmatmul.mubr.bf16.gmra.mrb[0].mxu0 %v1052
        %v1527 = vpop.f32.mrb[0].mxu0
        %v1528 = vadd.f32 %v1135, %v1527
        %v1529 = vpop.f32.mrb[0].mxu0
        %v1530 = vadd.f32 %v1139, %v1529
        %v1531 = vpop.f32.mrb[0].mxu0
        %v1532 = vadd.f32 %v1135, %v1531
        %v1533 = vpop.f32.mrb[0].mxu0
        %v1534 = vadd.f32 %v1139, %v1533
        %1535 = vmatprep.mubr.bf16.mxu0 %v1055
        %1536 = vmatmul.mubr.bf16.gmra.mrb[0].mxu0 %v1054
        %v1537 = vpop.f32.mrb[0].mxu0
        %v1538 = vadd.f32 %v1135, %v1537
        %v1539 = vpop.f32.mrb[0].mxu0
        %v1540 = vadd.f32 %v1139, %v1539
        %v1541 = vpop.f32.mrb[0].mxu0
        %v1542 = vadd.f32 %v1135, %v1541
        %v1543 = vpop.f32.mrb[0].mxu0
        %v1544 = vadd.f32 %v1139, %v1543
        %1545 = vmatprep.mubr.bf16.mxu0 %v1057
        %1546 = vmatmul.mubr.bf16.gmra.mrb[0].mxu0 %v1056
        %v1547 = vpop.f32.mrb[0].mxu0
        %v1548 = vadd.f32 %v1135, %v1547
        %v1549 = vpop.f32.mrb[0].mxu0
        %v1550 = vadd.f32 %v1139, %v1549
        %v1551 = vpop.f32.mrb[0].mxu0
        %v1552 = vadd.f32 %v1135, %v1551
        %v1553 = vpop.f32.mrb[0].mxu0
        %v1554 = vadd.f32 %v1139, %v1553
        %1555 = vmatprep.mubr.bf16.mxu0 %v1059
        %1556 = vmatmul.mubr.bf16.gmra.mrb[0].mxu0 %v1058
        %v1557 = vpop.f32.mrb[0].mxu0
        %v1558 = vadd.f32 %v1135, %v1557
        %v1559 = vpop.f32.mrb[0].mxu0
        %v1560 = vadd.f32 %v1139, %v1559
        %v1561 = vpop.f32.mrb[0].mxu0
        %v1562 = vadd.f32 %v1135, %v1561
        %v1563 = vpop.f32.mrb[0].mxu0
        %v1564 = vadd.f32 %v1139, %v1563
        %1565 = vmatprep.mubr.bf16.mxu0 %v1061
        %1566 = vmatmul.mubr.bf16.gmra.mrb[0].mxu0 %v1060
        %v1567 = vpop.f32.mrb[0].mxu0
        %v1568 = vadd.f32 %v1135, %v1567
        %v1569 = vpop.f32.mrb[0].mxu0
        %v1570 = vadd.f32 %v1139, %v1569
        %v1571 = vpop.f32.mrb[0].mxu0
        %v1572 = vadd.f32 %v1135, %v1571
        %v1573 = vpop.f32.mrb[0].mxu0
        %v1574 = vadd.f32 %v1139, %v1573
        %1575 = vmatprep.mubr.bf16.mxu0 %v1063
        %1576 = vmatmul.mubr.bf16.gmra.mrb[0].mxu0 %v1062
        %v1577 = vpop.f32.mrb[0].mxu0
        %v1578 = vadd.f32 %v1135, %v1577
        %v1579 = vpop.f32.mrb[0].mxu0
        %v1580 = vadd.f32 %v1139, %v1579
        %v1581 = vpop.f32.mrb[0].mxu0
        %v1582 = vadd.f32 %v1135, %v1581
        %v1583 = vpop.f32.mrb[0].mxu0
        %v1584 = vadd.f32 %v1139, %v1583
        %1585 = vmatprep.mubr.bf16.mxu0 %v1065
        %1586 = vmatmul.mubr.bf16.gmra.mrb[0].mxu0 %v1064
        %v1587 = vpop.f32.mrb[0].mxu0
        %v1588 = vadd.f32 %v1135, %v1587
        %v1589 = vpop.f32.mrb[0].mxu0
        %v1590 = vadd.f32 %v1139, %v1589
        %v1591 = vpop.f32.mrb[0].mxu0
        %v1592 = vadd.f32 %v1135, %v1591
        %v1593 = vpop.f32.mrb[0].mxu0
        %v1594 = vadd.f32 %v1139, %v1593
        %1595 = vdwg.mxu0
        %1596 = vmatprep.subr.bf16.mxu0 0
        %1597 = vmatpush1.bf16.msra.mxu0 %v1309
        %1598 = vmatprep.subr.bf16.mxu0 0
        %1599 = vmatpush1.bf16.msra.mxu0 %v1312
        %1600 = vmatprep.subr.bf16.mxu0 0
        %1601 = vmatpush1.bf16.msra.mxu0 %v1315
        %1602 = vmatprep.subr.bf16.mxu0 0
        %1603 = vmatpush1.bf16.msra.mxu0 %v1318
        %1604 = vmatprep.subr.bf16.mxu0 0
        %1605 = vmatpush1.bf16.msra.mxu0 %v1321
        %1606 = vmatprep.subr.bf16.mxu0 0
        %1607 = vmatpush1.bf16.msra.mxu0 %v1324
        %1608 = vmatprep.subr.bf16.mxu0 0
        %1609 = vmatpush1.bf16.msra.mxu0 %v1327
        %1610 = vmatprep.subr.bf16.mxu0 0
        %1611 = vmatpush1.bf16.msra.mxu0 %v1330
        %1612 = vmatprep.subr.bf16.mxu0 0
        %1613 = vmatpush1.bf16.msra.mxu0 %v1333
        %1614 = vmatprep.subr.bf16.mxu0 0
        %1615 = vmatpush1.bf16.msra.mxu0 %v1336
        %1616 = vmatprep.subr.bf16.mxu0 0
        %1617 = vmatpush1.bf16.msra.mxu0 %v1339
        %1618 = vmatprep.subr.bf16.mxu0 0
        %1619 = vmatpush1.bf16.msra.mxu0 %v1342
        %1620 = vmatprep.subr.bf16.mxu0 0
        %1621 = vmatpush1.bf16.msra.mxu0 %v1345
        %1622 = vmatprep.subr.bf16.mxu0 0
        %1623 = vmatpush1.bf16.msra.mxu0 %v1348
        %1624 = vmatprep.subr.bf16.mxu0 0
        %1625 = vmatpush1.bf16.msra.mxu0 %v1351
        %1626 = vmatprep.subr.bf16.mxu0 0
        %1627 = vmatpush1.bf16.msra.mxu0 %v1354
        %1628 = vmatprep.mubr.bf16.mxu0 %v1035
        %1629 = vmatmul.mubr.bf16.gmra.mrb[0].mxu0 %v1034
        %v1630 = vpop.f32.mrb[0].mxu0
        %v1631 = vadd.f32 %v1143, %v1630
        %v1632 = vpop.f32.mrb[0].mxu0
        %v1633 = vpop.f32.mrb[0].mxu0
        %v1634 = vadd.f32 %v1143, %v1633
        %v1635 = vpop.f32.mrb[0].mxu0
        %1636 = vmatprep.mubr.bf16.mxu0 %v1037
        %1637 = vmatmul.mubr.bf16.gmra.mrb[0].mxu0 %v1036
        %v1638 = vpop.f32.mrb[0].mxu0
        %v1639 = vadd.f32 %v1143, %v1638
        %v1640 = vpop.f32.mrb[0].mxu0
        %v1641 = vpop.f32.mrb[0].mxu0
        %v1642 = vadd.f32 %v1143, %v1641
        %v1643 = vpop.f32.mrb[0].mxu0
        %1644 = vmatprep.mubr.bf16.mxu0 %v1039
        %1645 = vmatmul.mubr.bf16.gmra.mrb[0].mxu0 %v1038
        %v1646 = vpop.f32.mrb[0].mxu0
        %v1647 = vadd.f32 %v1143, %v1646
        %v1648 = vpop.f32.mrb[0].mxu0
        %v1649 = vpop.f32.mrb[0].mxu0
        %v1650 = vadd.f32 %v1143, %v1649
        %v1651 = vpop.f32.mrb[0].mxu0
        %1652 = vmatprep.mubr.bf16.mxu0 %v1041
        %1653 = vmatmul.mubr.bf16.gmra.mrb[0].mxu0 %v1040
        %v1654 = vpop.f32.mrb[0].mxu0
        %v1655 = vadd.f32 %v1143, %v1654
        %v1656 = vpop.f32.mrb[0].mxu0
        %v1657 = vpop.f32.mrb[0].mxu0
        %v1658 = vadd.f32 %v1143, %v1657
        %v1659 = vpop.f32.mrb[0].mxu0
        %1660 = vmatprep.mubr.bf16.mxu0 %v1043
        %1661 = vmatmul.mubr.bf16.gmra.mrb[0].mxu0 %v1042
        %v1662 = vpop.f32.mrb[0].mxu0
        %v1663 = vadd.f32 %v1143, %v1662
        %v1664 = vpop.f32.mrb[0].mxu0
        %v1665 = vpop.f32.mrb[0].mxu0
        %v1666 = vadd.f32 %v1143, %v1665
        %v1667 = vpop.f32.mrb[0].mxu0
        %1668 = vmatprep.mubr.bf16.mxu0 %v1045
        %1669 = vmatmul.mubr.bf16.gmra.mrb[0].mxu0 %v1044
        %v1670 = vpop.f32.mrb[0].mxu0
        %v1671 = vadd.f32 %v1143, %v1670
        %v1672 = vpop.f32.mrb[0].mxu0
        %v1673 = vpop.f32.mrb[0].mxu0
        %v1674 = vadd.f32 %v1143, %v1673
        %v1675 = vpop.f32.mrb[0].mxu0
        %1676 = vmatprep.mubr.bf16.mxu0 %v1047
        %1677 = vmatmul.mubr.bf16.gmra.mrb[0].mxu0 %v1046
        %v1678 = vpop.f32.mrb[0].mxu0
        %v1679 = vadd.f32 %v1143, %v1678
        %v1680 = vpop.f32.mrb[0].mxu0
        %v1681 = vpop.f32.mrb[0].mxu0
        %v1682 = vadd.f32 %v1143, %v1681
        %v1683 = vpop.f32.mrb[0].mxu0
        %1684 = vmatprep.mubr.bf16.mxu0 %v1049
        %1685 = vmatmul.mubr.bf16.gmra.mrb[0].mxu0 %v1048
        %v1686 = vpop.f32.mrb[0].mxu0
        %v1687 = vadd.f32 %v1143, %v1686
        %v1688 = vpop.f32.mrb[0].mxu0
        %v1689 = vpop.f32.mrb[0].mxu0
        %v1690 = vadd.f32 %v1143, %v1689
        %v1691 = vpop.f32.mrb[0].mxu0
        %1692 = vmatprep.mubr.bf16.mxu0 %v1051
        %1693 = vmatmul.mubr.bf16.gmra.mrb[0].mxu0 %v1050
        %v1694 = vpop.f32.mrb[0].mxu0
        %v1695 = vadd.f32 %v1143, %v1694
        %v1696 = vpop.f32.mrb[0].mxu0
        %v1697 = vpop.f32.mrb[0].mxu0
        %v1698 = vadd.f32 %v1143, %v1697
        %v1699 = vpop.f32.mrb[0].mxu0
        %1700 = vmatprep.mubr.bf16.mxu0 %v1053
        %1701 = vmatmul.mubr.bf16.gmra.mrb[0].mxu0 %v1052
        %v1702 = vpop.f32.mrb[0].mxu0
        %v1703 = vadd.f32 %v1143, %v1702
        %v1704 = vpop.f32.mrb[0].mxu0
        %v1705 = vpop.f32.mrb[0].mxu0
        %v1706 = vadd.f32 %v1143, %v1705
        %v1707 = vpop.f32.mrb[0].mxu0
        %1708 = vmatprep.mubr.bf16.mxu0 %v1055
        %1709 = vmatmul.mubr.bf16.gmra.mrb[0].mxu0 %v1054
        %v1710 = vpop.f32.mrb[0].mxu0
        %v1711 = vadd.f32 %v1143, %v1710
        %v1712 = vpop.f32.mrb[0].mxu0
        %v1713 = vpop.f32.mrb[0].mxu0
        %v1714 = vadd.f32 %v1143, %v1713
        %v1715 = vpop.f32.mrb[0].mxu0
        %1716 = vmatprep.mubr.bf16.mxu0 %v1057
        %1717 = vmatmul.mubr.bf16.gmra.mrb[0].mxu0 %v1056
        %v1718 = vpop.f32.mrb[0].mxu0
        %v1719 = vadd.f32 %v1143, %v1718
        %v1720 = vpop.f32.mrb[0].mxu0
        %v1721 = vpop.f32.mrb[0].mxu0
        %v1722 = vadd.f32 %v1143, %v1721
        %v1723 = vpop.f32.mrb[0].mxu0
        %1724 = vmatprep.mubr.bf16.mxu0 %v1059
        %1725 = vmatmul.mubr.bf16.gmra.mrb[0].mxu0 %v1058
        %v1726 = vpop.f32.mrb[0].mxu0
        %v1727 = vadd.f32 %v1143, %v1726
        %v1728 = vpop.f32.mrb[0].mxu0
        %v1729 = vpop.f32.mrb[0].mxu0
        %v1730 = vadd.f32 %v1143, %v1729
        %v1731 = vpop.f32.mrb[0].mxu0
        %1732 = vmatprep.mubr.bf16.mxu0 %v1061
        %1733 = vmatmul.mubr.bf16.gmra.mrb[0].mxu0 %v1060
        %v1734 = vpop.f32.mrb[0].mxu0
        %v1735 = vadd.f32 %v1143, %v1734
        %v1736 = vpop.f32.mrb[0].mxu0
        %v1737 = vpop.f32.mrb[0].mxu0
        %v1738 = vadd.f32 %v1143, %v1737
        %v1739 = vpop.f32.mrb[0].mxu0
        %1740 = vmatprep.mubr.bf16.mxu0 %v1063
        %1741 = vmatmul.mubr.bf16.gmra.mrb[0].mxu0 %v1062
        %v1742 = vpop.f32.mrb[0].mxu0
        %v1743 = vadd.f32 %v1143, %v1742
        %v1744 = vpop.f32.mrb[0].mxu0
        %v1745 = vpop.f32.mrb[0].mxu0
        %v1746 = vadd.f32 %v1143, %v1745
        %v1747 = vpop.f32.mrb[0].mxu0
        %1748 = vmatprep.mubr.bf16.mxu0 %v1065
        %1749 = vmatmul.mubr.bf16.gmra.mrb[0].mxu0 %v1064
        %v1750 = vpop.f32.mrb[0].mxu0
        %v1751 = vadd.f32 %v1143, %v1750
        %v1752 = vpop.f32.mrb[0].mxu0
        %v1753 = vpop.f32.mrb[0].mxu0
        %v1754 = vadd.f32 %v1143, %v1753
        %v1755 = vpop.f32.mrb[0].mxu0
        %1756 = vdwg.mxu0
        %v1757 = vpack.c.bf16 %v1442, %v1438
        %v1758 = vpack.c.bf16 %v1444, %v1440
        %v1759 = vpack.c.bf16 %v1634, %v1631
        %v1760 = vpack.c.bf16 %v1452, %v1448
        %v1761 = vpack.c.bf16 %v1454, %v1450
        %v1762 = vpack.c.bf16 %v1642, %v1639
        %v1763 = vpack.c.bf16 %v1462, %v1458
        %v1764 = vpack.c.bf16 %v1464, %v1460
        %v1765 = vpack.c.bf16 %v1650, %v1647
        %v1766 = vpack.c.bf16 %v1472, %v1468
        %v1767 = vpack.c.bf16 %v1474, %v1470
        %v1768 = vpack.c.bf16 %v1658, %v1655
        %v1769 = vpack.c.bf16 %v1482, %v1478
        %v1770 = vpack.c.bf16 %v1484, %v1480
        %v1771 = vpack.c.bf16 %v1666, %v1663
        %v1772 = vpack.c.bf16 %v1492, %v1488
        %v1773 = vpack.c.bf16 %v1494, %v1490
        %v1774 = vpack.c.bf16 %v1674, %v1671
        %v1775 = vpack.c.bf16 %v1502, %v1498
        %v1776 = vpack.c.bf16 %v1504, %v1500
        %v1777 = vpack.c.bf16 %v1682, %v1679
        %v1778 = vpack.c.bf16 %v1512, %v1508
        %v1779 = vpack.c.bf16 %v1514, %v1510
        %v1780 = vpack.c.bf16 %v1690, %v1687
        %v1781 = vpack.c.bf16 %v1522, %v1518
        %v1782 = vpack.c.bf16 %v1524, %v1520
        %v1783 = vpack.c.bf16 %v1698, %v1695
        %v1784 = vpack.c.bf16 %v1532, %v1528
        %v1785 = vpack.c.bf16 %v1534, %v1530
        %v1786 = vpack.c.bf16 %v1706, %v1703
        %v1787 = vpack.c.bf16 %v1542, %v1538
        %v1788 = vpack.c.bf16 %v1544, %v1540
        %v1789 = vpack.c.bf16 %v1714, %v1711
        %v1790 = vpack.c.bf16 %v1552, %v1548
        %v1791 = vpack.c.bf16 %v1554, %v1550
        %v1792 = vpack.c.bf16 %v1722, %v1719
        %v1793 = vpack.c.bf16 %v1562, %v1558
        %v1794 = vpack.c.bf16 %v1564, %v1560
        %v1795 = vpack.c.bf16 %v1730, %v1727
        %v1796 = vpack.c.bf16 %v1572, %v1568
        %v1797 = vpack.c.bf16 %v1574, %v1570
        %v1798 = vpack.c.bf16 %v1738, %v1735
        %v1799 = vpack.c.bf16 %v1582, %v1578
        %v1800 = vpack.c.bf16 %v1584, %v1580
        %v1801 = vpack.c.bf16 %v1746, %v1743
        %v1802 = vpack.c.bf16 %v1592, %v1588
        %v1803 = vpack.c.bf16 %v1594, %v1590
        %v1804 = vpack.c.bf16 %v1754, %v1751
        %v1853 = vunpack.c.l.b16 %v1757
        %v1854 = vunpack.c.l.b16 %v1758
        %v1855 = vunpack.c.l.b16 %v1759
        %v1856 = vunpack.c.h.b16 %v1757
        %v1857 = vunpack.c.h.b16 %v1758
        %v1858 = vunpack.c.h.b16 %v1759
        %v1859 = vunpack.c.l.b16 %v1760
        %v1860 = vunpack.c.l.b16 %v1761
        %v1861 = vunpack.c.l.b16 %v1762
        %v1862 = vunpack.c.h.b16 %v1760
        %v1863 = vunpack.c.h.b16 %v1761
        %v1864 = vunpack.c.h.b16 %v1762
        %v1865 = vunpack.c.l.b16 %v1763
        %v1866 = vunpack.c.l.b16 %v1764
        %v1867 = vunpack.c.l.b16 %v1765
        %v1868 = vunpack.c.h.b16 %v1763
        %v1869 = vunpack.c.h.b16 %v1764
        %v1870 = vunpack.c.h.b16 %v1765
        %v1871 = vunpack.c.l.b16 %v1766
        %v1872 = vunpack.c.l.b16 %v1767
        %v1873 = vunpack.c.l.b16 %v1768
        %v1874 = vunpack.c.h.b16 %v1766
        %v1875 = vunpack.c.h.b16 %v1767
        %v1876 = vunpack.c.h.b16 %v1768
        %v1877 = vunpack.c.l.b16 %v1769
        %v1878 = vunpack.c.l.b16 %v1770
        %v1879 = vunpack.c.l.b16 %v1771
        %v1880 = vunpack.c.h.b16 %v1769
        %v1881 = vunpack.c.h.b16 %v1770
        %v1882 = vunpack.c.h.b16 %v1771
        %v1883 = vunpack.c.l.b16 %v1772
        %v1884 = vunpack.c.l.b16 %v1773
        %v1885 = vunpack.c.l.b16 %v1774
        %v1886 = vunpack.c.h.b16 %v1772
        %v1887 = vunpack.c.h.b16 %v1773
        %v1888 = vunpack.c.h.b16 %v1774
        %v1889 = vunpack.c.l.b16 %v1775
        %v1890 = vunpack.c.l.b16 %v1776
        %v1891 = vunpack.c.l.b16 %v1777
        %v1892 = vunpack.c.h.b16 %v1775
        %v1893 = vunpack.c.h.b16 %v1776
        %v1894 = vunpack.c.h.b16 %v1777
        %v1895 = vunpack.c.l.b16 %v1778
        %v1896 = vunpack.c.l.b16 %v1779
        %v1897 = vunpack.c.l.b16 %v1780
        %v1898 = vunpack.c.h.b16 %v1778
        %v1899 = vunpack.c.h.b16 %v1779
        %v1900 = vunpack.c.h.b16 %v1780
        %v1901 = vunpack.c.l.b16 %v1781
        %v1902 = vunpack.c.l.b16 %v1782
        %v1903 = vunpack.c.l.b16 %v1783
        %v1904 = vunpack.c.h.b16 %v1781
        %v1905 = vunpack.c.h.b16 %v1782
        %v1906 = vunpack.c.h.b16 %v1783
        %v1907 = vunpack.c.l.b16 %v1784
        %v1908 = vunpack.c.l.b16 %v1785
        %v1909 = vunpack.c.l.b16 %v1786
        %v1910 = vunpack.c.h.b16 %v1784
        %v1911 = vunpack.c.h.b16 %v1785
        %v1912 = vunpack.c.h.b16 %v1786
        %v1913 = vunpack.c.l.b16 %v1787
        %v1914 = vunpack.c.l.b16 %v1788
        %v1915 = vunpack.c.l.b16 %v1789
        %v1916 = vunpack.c.h.b16 %v1787
        %v1917 = vunpack.c.h.b16 %v1788
        %v1918 = vunpack.c.h.b16 %v1789
        %v1919 = vunpack.c.l.b16 %v1790
        %v1920 = vunpack.c.l.b16 %v1791
        %v1921 = vunpack.c.l.b16 %v1792
        %v1922 = vunpack.c.h.b16 %v1790
        %v1923 = vunpack.c.h.b16 %v1791
        %v1924 = vunpack.c.h.b16 %v1792
        %v1925 = vunpack.c.l.b16 %v1793
        %v1926 = vunpack.c.l.b16 %v1794
        %v1927 = vunpack.c.l.b16 %v1795
        %v1928 = vunpack.c.h.b16 %v1793
        %v1929 = vunpack.c.h.b16 %v1794
        %v1930 = vunpack.c.h.b16 %v1795
        %v1931 = vunpack.c.l.b16 %v1796
        %v1932 = vunpack.c.l.b16 %v1797
        %v1933 = vunpack.c.l.b16 %v1798
        %v1934 = vunpack.c.h.b16 %v1796
        %v1935 = vunpack.c.h.b16 %v1797
        %v1936 = vunpack.c.h.b16 %v1798
        %v1937 = vunpack.c.l.b16 %v1799
        %v1938 = vunpack.c.l.b16 %v1800
        %v1939 = vunpack.c.l.b16 %v1801
        %v1940 = vunpack.c.h.b16 %v1799
        %v1941 = vunpack.c.h.b16 %v1800
        %v1942 = vunpack.c.h.b16 %v1801
        %v1943 = vunpack.c.l.b16 %v1802
        %v1944 = vunpack.c.l.b16 %v1803
        %v1945 = vunpack.c.l.b16 %v1804
        %v1946 = vunpack.c.h.b16 %v1802
        %v1947 = vunpack.c.h.b16 %v1803
        %v1948 = vunpack.c.h.b16 %v1804
        %v1949 = vpack.c.b16 %v1854, %v1853
        %v1950 = vpack.c.b16 %v1855, %v1855
        %v1951 = vpack.c.b16 %v1857, %v1856
        %v1952 = vpack.c.b16 %v1858, %v1858
        %v1953 = vpack.c.b16 %v1860, %v1859
        %v1954 = vpack.c.b16 %v1861, %v1861
        %v1955 = vpack.c.b16 %v1863, %v1862
        %v1956 = vpack.c.b16 %v1864, %v1864
        %v1957 = vpack.c.b16 %v1866, %v1865
        %v1958 = vpack.c.b16 %v1867, %v1867
        %v1959 = vpack.c.b16 %v1869, %v1868
        %v1960 = vpack.c.b16 %v1870, %v1870
        %v1961 = vpack.c.b16 %v1872, %v1871
        %v1962 = vpack.c.b16 %v1873, %v1873
        %v1963 = vpack.c.b16 %v1875, %v1874
        %v1964 = vpack.c.b16 %v1876, %v1876
        %v1965 = vpack.c.b16 %v1878, %v1877
        %v1966 = vpack.c.b16 %v1879, %v1879
        %v1967 = vpack.c.b16 %v1881, %v1880
        %v1968 = vpack.c.b16 %v1882, %v1882
        %v1969 = vpack.c.b16 %v1884, %v1883
        %v1970 = vpack.c.b16 %v1885, %v1885
        %v1971 = vpack.c.b16 %v1887, %v1886
        %v1972 = vpack.c.b16 %v1888, %v1888
        %v1973 = vpack.c.b16 %v1890, %v1889
        %v1974 = vpack.c.b16 %v1891, %v1891
        %v1975 = vpack.c.b16 %v1893, %v1892
        %v1976 = vpack.c.b16 %v1894, %v1894
        %v1977 = vpack.c.b16 %v1896, %v1895
        %v1978 = vpack.c.b16 %v1897, %v1897
        %v1979 = vpack.c.b16 %v1899, %v1898
        %v1980 = vpack.c.b16 %v1900, %v1900
        %v1981 = vpack.c.b16 %v1902, %v1901
        %v1982 = vpack.c.b16 %v1903, %v1903
        %v1983 = vpack.c.b16 %v1905, %v1904
        %v1984 = vpack.c.b16 %v1906, %v1906
        %v1985 = vpack.c.b16 %v1908, %v1907
        %v1986 = vpack.c.b16 %v1909, %v1909
        %v1987 = vpack.c.b16 %v1911, %v1910
        %v1988 = vpack.c.b16 %v1912, %v1912
        %v1989 = vpack.c.b16 %v1914, %v1913
        %v1990 = vpack.c.b16 %v1915, %v1915
        %v1991 = vpack.c.b16 %v1917, %v1916
        %v1992 = vpack.c.b16 %v1918, %v1918
        %v1993 = vpack.c.b16 %v1920, %v1919
        %v1994 = vpack.c.b16 %v1921, %v1921
        %v1995 = vpack.c.b16 %v1923, %v1922
        %v1996 = vpack.c.b16 %v1924, %v1924
        %v1997 = vpack.c.b16 %v1926, %v1925
        %v1998 = vpack.c.b16 %v1927, %v1927
        %v1999 = vpack.c.b16 %v1929, %v1928
        %v2000 = vpack.c.b16 %v1930, %v1930
        %v2001 = vpack.c.b16 %v1932, %v1931
        %v2002 = vpack.c.b16 %v1933, %v1933
        %v2003 = vpack.c.b16 %v1935, %v1934
        %v2004 = vpack.c.b16 %v1936, %v1936
        %v2005 = vpack.c.b16 %v1938, %v1937
        %v2006 = vpack.c.b16 %v1939, %v1939
        %v2007 = vpack.c.b16 %v1941, %v1940
        %v2008 = vpack.c.b16 %v1942, %v1942
        %v2009 = vpack.c.b16 %v1944, %v1943
        %v2010 = vpack.c.b16 %v1945, %v1945
        %v2011 = vpack.c.b16 %v1947, %v1946
        %v2012 = vpack.c.b16 %v1948, %v1948
        %2077 = vst [vmem:[%s294] sm:$0xff] %v1949
        %2078 = vst [vmem:[%s294 + $0x8] sm:$0xf] %v1950
        %2079 = vst [vmem:[%s294 + $0xc] sm:$0xff] %v1951
        %2080 = vst [vmem:[%s294 + $0x14] sm:$0xf] %v1952
        %2081 = vst [vmem:[%s294 + $0x18] sm:$0xff] %v1953
        %2082 = vst [vmem:[%s294 + $0x20] sm:$0xf] %v1954
        %2083 = vst [vmem:[%s294 + $0x24] sm:$0xff] %v1955
        %2084 = vst [vmem:[%s294 + $0x2c] sm:$0xf] %v1956
        %2085 = vst [vmem:[%s294 + $0x30] sm:$0xff] %v1957
        %2086 = vst [vmem:[%s294 + $0x38] sm:$0xf] %v1958
        %2087 = vst [vmem:[%s294 + $0x3c] sm:$0xff] %v1959
        %2088 = vst [vmem:[%s294 + $0x44] sm:$0xf] %v1960
        %2089 = vst [vmem:[%s294 + $0x48] sm:$0xff] %v1961
        %2090 = vst [vmem:[%s294 + $0x50] sm:$0xf] %v1962
        %2091 = vst [vmem:[%s294 + $0x54] sm:$0xff] %v1963
        %2092 = vst [vmem:[%s294 + $0x5c] sm:$0xf] %v1964
        %2093 = vst [vmem:[%s294 + $0x60] sm:$0xff] %v1965
        %2094 = vst [vmem:[%s294 + $0x68] sm:$0xf] %v1966
        %2095 = vst [vmem:[%s294 + $0x6c] sm:$0xff] %v1967
        %2096 = vst [vmem:[%s294 + $0x74] sm:$0xf] %v1968
        %2097 = vst [vmem:[%s294 + $0x78] sm:$0xff] %v1969
        %2098 = vst [vmem:[%s294 + $0x80] sm:$0xf] %v1970
        %2099 = vst [vmem:[%s294 + $0x84] sm:$0xff] %v1971
        %2100 = vst [vmem:[%s294 + $0x8c] sm:$0xf] %v1972
        %2101 = vst [vmem:[%s294 + $0x90] sm:$0xff] %v1973
        %2102 = vst [vmem:[%s294 + $0x98] sm:$0xf] %v1974
        %2103 = vst [vmem:[%s294 + $0x9c] sm:$0xff] %v1975
        %2104 = vst [vmem:[%s294 + $0xa4] sm:$0xf] %v1976
        %2105 = vst [vmem:[%s294 + $0xa8] sm:$0xff] %v1977
        %2106 = vst [vmem:[%s294 + $0xb0] sm:$0xf] %v1978
        %2107 = vst [vmem:[%s294 + $0xb4] sm:$0xff] %v1979
        %2108 = vst [vmem:[%s294 + $0xbc] sm:$0xf] %v1980
        %2109 = vst [vmem:[%s294 + $0xc0] sm:$0xff] %v1981
        %2110 = vst [vmem:[%s294 + $0xc8] sm:$0xf] %v1982
        %2111 = vst [vmem:[%s294 + $0xcc] sm:$0xff] %v1983
        %2112 = vst [vmem:[%s294 + $0xd4] sm:$0xf] %v1984
        %2113 = vst [vmem:[%s294 + $0xd8] sm:$0xff] %v1985
        %2114 = vst [vmem:[%s294 + $0xe0] sm:$0xf] %v1986
        %2115 = vst [vmem:[%s294 + $0xe4] sm:$0xff] %v1987
        %2116 = vst [vmem:[%s294 + $0xec] sm:$0xf] %v1988
        %2117 = vst [vmem:[%s294 + $0xf0] sm:$0xff] %v1989
        %2118 = vst [vmem:[%s294 + $0xf8] sm:$0xf] %v1990
        %2119 = vst [vmem:[%s294 + $0xfc] sm:$0xff] %v1991
        %2120 = vst [vmem:[%s294 + $0x104] sm:$0xf] %v1992
        %2121 = vst [vmem:[%s294 + $0x108] sm:$0xff] %v1993
        %2122 = vst [vmem:[%s294 + $0x110] sm:$0xf] %v1994
        %2123 = vst [vmem:[%s294 + $0x114] sm:$0xff] %v1995
        %2124 = vst [vmem:[%s294 + $0x11c] sm:$0xf] %v1996
        %2125 = vst [vmem:[%s294 + $0x120] sm:$0xff] %v1997
        %2126 = vst [vmem:[%s294 + $0x128] sm:$0xf] %v1998
        %2127 = vst [vmem:[%s294 + $0x12c] sm:$0xff] %v1999
        %2128 = vst [vmem:[%s294 + $0x134] sm:$0xf] %v2000
        %2129 = vst [vmem:[%s294 + $0x138] sm:$0xff] %v2001
        %2130 = vst [vmem:[%s294 + $0x140] sm:$0xf] %v2002
        %2131 = vst [vmem:[%s294 + $0x144] sm:$0xff] %v2003
        %2132 = vst [vmem:[%s294 + $0x14c] sm:$0xf] %v2004
        %2133 = vst [vmem:[%s294 + $0x150] sm:$0xff] %v2005
        %2134 = vst [vmem:[%s294 + $0x158] sm:$0xf] %v2006
        %2135 = vst [vmem:[%s294 + $0x15c] sm:$0xff] %v2007
        %2136 = vst [vmem:[%s294 + $0x164] sm:$0xf] %v2008
        %2137 = vst [vmem:[%s294 + $0x168] sm:$0xff] %v2009
        %2138 = vst [vmem:[%s294 + $0x170] sm:$0xf] %v2010
        %2139 = vst [vmem:[%s294 + $0x174] sm:$0xff] %v2011
        %2140 = vst [vmem:[%s294 + $0x17c] sm:$0xf] %v2012
        %s2141 = sand.u32 %s165, 1
        %s2142 = scalar_lea.sflag [#allocation4], %s2141
        %s2143 = sand.u32 %s165, 1
        %s2144 = smul.addr %s2143, 384
        %s2145 = scalar_lea.vmem [#allocation7], %s2144
        // Predicated region
        $region49: #{tpu_custom_call.1} parent=39 // pred_check
          %p2146 = pneg %p175
        $region50: #{tpu_custom_call.1} parent=39 // pred_check_branch
          %2148 = sbr.rel (%p2146) target = $region52
        $region51: #{tpu_custom_call.1} parent=39 // pred_region
          %s2149 = smul.u32 32, %s27
          %s2150 = smul.u32 3, %s28
          %s2152 = ssub.s32 6144, 6144
          %2153 = vsyncadd %s2142, %s2152
          %s2154 = smul.addr %s2149, 6
          %s2155 = sadd.s32 %s2150, %s2154
          %s2156 = smul.addr %s2155, 64
          %s2157 = scalar_lea.hbm %s5, %s2156
          %s2158 = sshll.u32 %s2145, 4
          %s2159 = int_to_ptr.vmem [resolvable:$true] %s2158
          %2164 = dma.vmem_to_hbm [thread:$0]  %s2159, 6144, %s2157, %s2142, 192, 384, 12
        $region52: #{tpu_custom_call.1} parent=39 // pred_fallthru
          _
      $region40: #{tpu_custom_call.1} parent=5 // pred_fallthru
        _
      %p2165 = scmp.le.s32.totalorder 2, %s18
      // Predicated region
      $region53: #{tpu_custom_call.1} parent=5 // pred_check
        %p2166 = pneg %p2165
      $region54: #{tpu_custom_call.1} parent=5 // pred_check_branch
        %2168 = sbr.rel (%p2166) target = $region56
      $region55: #{tpu_custom_call.1} parent=5 // pred_region
        %s2169 = ssub.s32 %s18, 2
        // Predicated region
        $region57: #{tpu_custom_call.1} parent=55 // pred_check
          %p2170 = pneg %p181
        $region58: #{tpu_custom_call.1} parent=55 // pred_check_branch
          %2172 = sbr.rel (%p2170) target = $region60
        $region59: #{tpu_custom_call.1} parent=55 // pred_region
          %s2173 = sand.u32 %s166, 1
          %s2174 = scalar_lea.sflag [#allocation4], %s2173
          %s2175 = sand.u32 %s166, 1
          %s2176 = smul.addr %s2175, 384
          %s2177 = scalar_lea.vmem [#allocation7], %s2176
          %2178 = dma.done %s2174, 6144
        $region60: #{tpu_custom_call.1} parent=55 // pred_fallthru
          _
      $region56: #{tpu_custom_call.1} parent=5 // pred_fallthru
        _
    $region6: #{tpu_custom_call.1} parent=1 // loop_footer
      %s22 = sadd.s32 1, %s18
    $region7: #{tpu_custom_call.1} parent=1 // loop_footer_branch
      %17 = sbr.rel target = $region3
    $region8: #{tpu_custom_call.1} parent=1 // loop_exit
      _
    %2179 = vsyncpa [#allocation3], 1
    %s2180 = scalar_lea.sflag [#allocation3], 1
    %2181 = vsyncpa %s2180, 1
    %2182 = vsyncpa [#allocation6], 1
    %s2183 = scalar_lea.sflag [#allocation6], 1
    %2184 = vsyncpa %s2183, 1
    %2185 = vsyncpa [#allocation4], 1
    %s2186 = scalar_lea.sflag [#allocation4], 1
    %2187 = vsyncpa %s2186, 1

</llo_original>
